<compile_context>
chip_gen: v7x
topology: tpu7x:2x2x1
jax: 0.10.0
libtpu: 0.0.40
codegen_flags: <defaults>
</compile_context>

<pallas_src>
import jax
import jax.numpy as jnp
from jax import lax
from jax.experimental import pallas as pl
from jax.experimental.pallas import tpu as pltpu

N_TRUE_FEATURES = 14
H1, H2, H3, OUT = 64, 32, 10, 1


def cachenet_kernel(x_ref,
                    w01_ref, b01_ref,   # fused in_layer+h3_layer: (32,14), (32,1)
                    w2_ref, b2_ref,     # h4_layer: (10,32), (10,1)
                    w3_ref, b3_ref,     # out_layer: (1,10), (1,1)
                    o_ref):
    x = x_ref[...]                                                   # (TB, 14)

    # Fused in_layer+h3_layer: contract on x's minor dim -> (32, TB), then ReLU.
    h = lax.dot_general(w01_ref[...], x,
                        dimension_numbers=(((1,), (1,)), ((), ())),
                        preferred_element_type=jnp.float32) + b01_ref[...]
    h = jnp.maximum(h, 0.0)

    # h4_layer: Linear(32 -> 10) + ReLU   (h4_drop is identity, p=0)
    h = jnp.dot(w2_ref[...], h, preferred_element_type=jnp.float32) + b2_ref[...]
    h = jnp.maximum(h, 0.0)

    # out_layer: Linear(10 -> 1) -> (1, TB), lane-dense store
    o_ref[...] = jnp.dot(w3_ref[...], h, preferred_element_type=jnp.float32) + b3_ref[...]


def _num_parallel_cores():
    """2 for multi-TensorCore chips (v7x / megacore), else 1."""
    try:
        kind = jax.devices()[0].device_kind.lower()
    except Exception:
        return 1
    return 2 if ("v7" in kind or "v4" in kind or "v5p" in kind) else 1


def _pick_tiling(B, tile_b, n_par):
    """Lane-aligned batch tile + grid length. Never produces empty tiles."""
    tile_b = max(128, (tile_b // 128) * 128)
    if B <= tile_b * n_par:
        # Small/medium batch: one step per TensorCore.
        tb = max(128, pl.cdiv(pl.cdiv(B, n_par), 128) * 128)
        return tb, pl.cdiv(B, tb)
    tb = tile_b
    n_tiles = pl.cdiv(B, tb)
    if n_par > 1 and n_tiles % n_par:
        # v7x: make the grid length even so both TCs get equal work.
        n_target = pl.cdiv(n_tiles, n_par) * n_par
        tb = max(128, pl.cdiv(pl.cdiv(B, n_target), 128) * 128)
        n_tiles = pl.cdiv(B, tb)
    return tb, n_tiles


def _fuse_in_h3(params):
    """Fold in_layer (no activation) into h3_layer offline, full f32 precision."""
    (w0, b0), (w1, b1), (w2, b2), (w3, b3) = params
    hp = lax.Precision.HIGHEST
    w01 = jnp.dot(w1, w0, precision=hp)            # (32, 14)
    b01 = jnp.dot(w1, b0, precision=hp) + b1       # (32, 1)
    return (w01, b01), (w2, b2), (w3, b3)


def cachenet_forward(x, params, *, tile_b=8192):
    """x: (B, 14) f32.  params: PyTorch layout w=(out,in), b=(out,1).  Returns (B, 1)."""
    B = x.shape[0]
    (w01, b01), (w2, b2), (w3, b3) = _fuse_in_h3(params)

    tb, n_tiles = _pick_tiling(B, tile_b, _num_parallel_cores())

    full = lambda a: pl.BlockSpec(a.shape, lambda i: (0, 0))

    y_row = pl.pallas_call(
        cachenet_kernel,
        out_shape=jax.ShapeDtypeStruct((OUT, B), jnp.float32),
        grid_spec=pltpu.PrefetchScalarGridSpec(
            num_scalar_prefetch=0,
            grid=(n_tiles,),
            in_specs=[
                pl.BlockSpec((tb, N_TRUE_FEATURES), lambda i: (i, 0)),  # x, natural layout
                full(w01), full(b01),
                full(w2), full(b2),
                full(w3), full(b3),
            ],
            out_specs=pl.BlockSpec((OUT, tb), lambda i: (0, i)),        # lane-dense (1, tb)
        ),
        compiler_params=pltpu.CompilerParams(
            dimension_semantics=("parallel",),
            vmem_limit_bytes=48 * 1024 * 1024,
        ),
    )(x, w01, b01, w2, b2, w3, b3)

    return jnp.transpose(y_row)                                        # (B, 1)


def init_params(key):
    """Deterministic synthetic parameters (PyTorch-like uniform fan-in init).

    Stored in PyTorch layout: w = (out_features, in_features), b = (out_features, 1).
    """
    def linear(key, fan_in, fan_out):
        k_w, k_b = jax.random.split(key)
        bound = 1.0 / jnp.sqrt(fan_in)
        w = jax.random.uniform(k_w, (fan_out, fan_in), jnp.float32, -bound, bound)
        b = jax.random.uniform(k_b, (fan_out, 1), jnp.float32, -bound, bound)
        return w, b

    keys = jax.random.split(key, 4)
    return (
        linear(keys[0], N_TRUE_FEATURES, H1),
        linear(keys[1], H1, H2),
        linear(keys[2], H2, H3),
        linear(keys[3], H3, OUT),
    )


def reference_forward(x, params):
    """Pure-JAX reference matching the PyTorch module (unfused)."""
    (w0, b0), (w1, b1), (w2, b2), (w3, b3) = params
    h = x @ w0.T + b0[:, 0]
    h = jnp.maximum(h @ w1.T + b1[:, 0], 0.0)
    h = jnp.maximum(h @ w2.T + b2[:, 0], 0.0)
    return h @ w3.T + b3[:, 0]


if __name__ == "__main__":
    key = jax.random.PRNGKey(0)
    k_x, k_p = jax.random.split(key)

    # B deliberately not a multiple of 128/8 to exercise the ragged-tail masking.
    B = 1000
    x = jax.random.normal(k_x, (B, N_TRUE_FEATURES), jnp.float32)
    params = init_params(k_p)

    y_ref = reference_forward(x, params)

    # Default path: one grid step on 1-TC chips, two equal steps on v7x.
    y = jax.block_until_ready(cachenet_forward(x, params))
    assert y.shape == (B, 1)
    # Tolerance slightly relaxed vs 1e-5: the offline W01 = w1 @ w0 fusion
    # reorders f32 accumulation relative to the unfused reference.
    assert jnp.allclose(y, y_ref, atol=1e-4, rtol=1e-4)

    # Multi-tile path (tile_b=256 -> 4 grid steps, ragged last tile 768..999):
    # exercises partial-block input reads and masked (1, tb) output stores.
    y2 = jax.block_until_ready(cachenet_forward(x, params, tile_b=256))
    assert y2.shape == (B, 1)
    assert jnp.allclose(y2, y_ref, atol=1e-4, rtol=1e-4)

    print("KERNEL_OK")
</pallas_src>

<mosaic_0001>
module attributes {stable_mosaic.version = 11 : i64} {
  func.func @cachenet_kernel(%arg0: i32, %arg1: memref<1024x14xf32, #tpu.memory_space<vmem>>, %arg2: memref<32x14xf32, #tpu.memory_space<vmem>>, %arg3: memref<32x1xf32, #tpu.memory_space<vmem>>, %arg4: memref<10x32xf32, #tpu.memory_space<vmem>>, %arg5: memref<10x1xf32, #tpu.memory_space<vmem>>, %arg6: memref<1x10xf32, #tpu.memory_space<vmem>>, %arg7: memref<1x1xf32, #tpu.memory_space<vmem>>, %arg8: memref<1x1024xf32, #tpu.memory_space<vmem>>) attributes {dimension_semantics = [#tpu.dimension_semantics<parallel>], iteration_bounds = array<i64: 1>, scalar_prefetch = 0 : i64, scratch_operands = 0 : i64, tpu.core_type = #tpu.core_type<tc>, window_params = [{transform_indices = @transform_0, window_bounds = array<i64: 1024, 14>}, {pipeline_mode = #tpu.pipeline_mode<synchronous>, transform_indices = @transform_1, window_bounds = array<i64: 32, 14>}, {pipeline_mode = #tpu.pipeline_mode<synchronous>, transform_indices = @transform_2, window_bounds = array<i64: 32, 1>}, {pipeline_mode = #tpu.pipeline_mode<synchronous>, transform_indices = @transform_3, window_bounds = array<i64: 10, 32>}, {pipeline_mode = #tpu.pipeline_mode<synchronous>, transform_indices = @transform_4, window_bounds = array<i64: 10, 1>}, {pipeline_mode = #tpu.pipeline_mode<synchronous>, transform_indices = @transform_5, window_bounds = array<i64: 1, 10>}, {pipeline_mode = #tpu.pipeline_mode<synchronous>, transform_indices = @transform_6, window_bounds = array<i64: 1, 1>}, {transform_indices = @transform_7, window_bounds = array<i64: 1, 1024>}]} {
    %c0 = arith.constant 0 : index
    %c0_0 = arith.constant 0 : index
    %0 = vector.load %arg1[%c0, %c0_0] : memref<1024x14xf32, #tpu.memory_space<vmem>>, vector<1024x14xf32>
    %c0_1 = arith.constant 0 : index
    %c0_2 = arith.constant 0 : index
    %1 = vector.load %arg2[%c0_1, %c0_2] : memref<32x14xf32, #tpu.memory_space<vmem>>, vector<32x14xf32>
    %cst = arith.constant dense<0.000000e+00> : vector<32x1024xf32>
    %2 = tpu.matmul %1, %0, %cst {dimension_numbers = #tpu.dot_dimension_numbers<[1], [1], [0], [0], [0, 0, 1, 0], [], []>} : vector<32x14xf32>, vector<1024x14xf32>, vector<32x1024xf32> -> vector<32x1024xf32>
    %c0_3 = arith.constant 0 : index
    %c0_4 = arith.constant 0 : index
    %3 = vector.load %arg3[%c0_3, %c0_4] : memref<32x1xf32, #tpu.memory_space<vmem>>, vector<32x1xf32>
    %4 = vector.broadcast %3 : vector<32x1xf32> to vector<32x1024xf32>
    %5 = arith.addf %2, %4 : vector<32x1024xf32>
    %cst_5 = arith.constant 0.000000e+00 : f32
    %6 = vector.broadcast %cst_5 : f32 to vector<32x1024xf32>
    %7 = arith.maximumf %5, %6 : vector<32x1024xf32>
    %c0_6 = arith.constant 0 : index
    %c0_7 = arith.constant 0 : index
    %8 = vector.load %arg4[%c0_6, %c0_7] : memref<10x32xf32, #tpu.memory_space<vmem>>, vector<10x32xf32>
    %cst_8 = arith.constant dense<0.000000e+00> : vector<10x1024xf32>
    %9 = tpu.matmul %8, %7, %cst_8 {dimension_numbers = #tpu.dot_dimension_numbers<[1], [0], [0], [1], [0, 0, 1, 1], [], []>} : vector<10x32xf32>, vector<32x1024xf32>, vector<10x1024xf32> -> vector<10x1024xf32>
    %c0_9 = arith.constant 0 : index
    %c0_10 = arith.constant 0 : index
    %10 = vector.load %arg5[%c0_9, %c0_10] : memref<10x1xf32, #tpu.memory_space<vmem>>, vector<10x1xf32>
    %11 = vector.broadcast %10 : vector<10x1xf32> to vector<10x1024xf32>
    %12 = arith.addf %9, %11 : vector<10x1024xf32>
    %cst_11 = arith.constant 0.000000e+00 : f32
    %13 = vector.broadcast %cst_11 : f32 to vector<10x1024xf32>
    %14 = arith.maximumf %12, %13 : vector<10x1024xf32>
    %c0_12 = arith.constant 0 : index
    %c0_13 = arith.constant 0 : index
    %15 = vector.load %arg6[%c0_12, %c0_13] : memref<1x10xf32, #tpu.memory_space<vmem>>, vector<1x10xf32>
    %cst_14 = arith.constant dense<0.000000e+00> : vector<1x1024xf32>
    %16 = tpu.matmul %15, %14, %cst_14 {dimension_numbers = #tpu.dot_dimension_numbers<[1], [0], [0], [1], [0, 0, 1, 1], [], []>} : vector<1x10xf32>, vector<10x1024xf32>, vector<1x1024xf32> -> vector<1x1024xf32>
    %c0_15 = arith.constant 0 : index
    %c0_16 = arith.constant 0 : index
    %17 = vector.load %arg7[%c0_15, %c0_16] : memref<1x1xf32, #tpu.memory_space<vmem>>, vector<1x1xf32>
    %18 = vector.broadcast %17 : vector<1x1xf32> to vector<1x1024xf32>
    %19 = arith.addf %16, %18 : vector<1x1024xf32>
    %c0_17 = arith.constant 0 : index
    %c0_18 = arith.constant 0 : index
    %20 = vector.load %arg8[%c0_17, %c0_18] : memref<1x1024xf32, #tpu.memory_space<vmem>>, vector<1x1024xf32>
    tpu.vector_store %arg8[%c0_17, %c0_18], %19 {strides = array<i32>} : memref<1x1024xf32, #tpu.memory_space<vmem>>, vector<1x1024xf32>,
    return
  }
  func.func @transform_0(%arg0: i32) -> (i32, i32) {
    %c0_i32 = arith.constant 0 : i32
    %c0_i32_0 = arith.constant 0 : i32
    return %arg0, %c0_i32 : i32, i32
  }
  func.func @transform_1(%arg0: i32) -> (i32, i32) {
    %c0_i32 = arith.constant 0 : i32
    %c0_i32_0 = arith.constant 0 : i32
    %c0_i32_1 = arith.constant 0 : i32
    return %c0_i32, %c0_i32_0 : i32, i32
  }
  func.func @transform_2(%arg0: i32) -> (i32, i32) {
    %c0_i32 = arith.constant 0 : i32
    %c0_i32_0 = arith.constant 0 : i32
    %c0_i32_1 = arith.constant 0 : i32
    return %c0_i32, %c0_i32_0 : i32, i32
  }
  func.func @transform_3(%arg0: i32) -> (i32, i32) {
    %c0_i32 = arith.constant 0 : i32
    %c0_i32_0 = arith.constant 0 : i32
    %c0_i32_1 = arith.constant 0 : i32
    return %c0_i32, %c0_i32_0 : i32, i32
  }
  func.func @transform_4(%arg0: i32) -> (i32, i32) {
    %c0_i32 = arith.constant 0 : i32
    %c0_i32_0 = arith.constant 0 : i32
    %c0_i32_1 = arith.constant 0 : i32
    return %c0_i32, %c0_i32_0 : i32, i32
  }
  func.func @transform_5(%arg0: i32) -> (i32, i32) {
    %c0_i32 = arith.constant 0 : i32
    %c0_i32_0 = arith.constant 0 : i32
    %c0_i32_1 = arith.constant 0 : i32
    return %c0_i32, %c0_i32_0 : i32, i32
  }
  func.func @transform_6(%arg0: i32) -> (i32, i32) {
    %c0_i32 = arith.constant 0 : i32
    %c0_i32_0 = arith.constant 0 : i32
    %c0_i32_1 = arith.constant 0 : i32
    return %c0_i32, %c0_i32_0 : i32, i32
  }
  func.func @transform_7(%arg0: i32) -> (i32, i32) {
    %c0_i32 = arith.constant 0 : i32
    %c0_i32_0 = arith.constant 0 : i32
    return %c0_i32, %arg0 : i32, i32
  }
}

</mosaic_0001>

<llo_original>
// kernel: tpu_custom_call.1
$region0: #{tpu_custom_call.1}
  #allocation0 [shape = 'u32[]', space=smem, size = 0x4, offset = 0x4, fixed_abs, tag = 'smem constant byte address 0x4 - core index']
  #allocation1 [shape = 'u32[144,128]{1,0:T(1,128)}', space=vmem, size = 0x12000, scoped, tag = 'internal scratch']
  #allocation2 [shape = 'f32[1,1]{1,0:T(1,128)S(1)}', space=vmem, size = 0x200, scoped, tag = 'scoped memory for tpu_custom_call.1']
  %s0 = inlined_call_operand.vmem [shape: f32[1000,14], index: 0, kind: input, shape index: {}]
  %s1 = inlined_call_operand.vmem [shape: f32[32,14], index: 1, kind: input, shape index: {}]
  %s2 = inlined_call_operand.vmem [shape: f32[32,1], index: 2, kind: input, shape index: {}]
  %s3 = inlined_call_operand.vmem [shape: f32[10,32], index: 3, kind: input, shape index: {}]
  %s4 = inlined_call_operand.vmem [shape: f32[10,1], index: 4, kind: input, shape index: {}]
  %s5 = inlined_call_operand.vmem [shape: f32[1,10], index: 5, kind: input, shape index: {}]
  %s6 = inlined_call_operand.<no memory space> [shape: f32[1,1], index: 6, kind: input, shape index: {}]
  %s7 = inlined_call_operand.hbm [shape: f32[1,1000], index: 7, kind: output, shape index: {}]
  %s8 = sld [smem:[#allocation0]]
  $region38: #{tpu_custom_call.1} parent=0
    _
  %s10 = ssub.s32 1, %s8
  %s11 = scalar_select 0, %s10, %s8
  %v12 = vstv %s6
  %13 = vst [vmem:[#allocation2] sm:$0x1] %v12
  $region1: #{tpu_custom_call.1} parent=0
    #allocation3 [shape = 'u8[4096]{0}', space=vmem, size = 0x1000, scoped, tag = 'output window, operand 0, single buffered']
    #allocation4 [shape = 's32[1]{0}', space=sflag, size = 0x4, scoped, tag = 'scoped memory for tpu_custom_call.1']
    %14 = vsyncpa [#allocation4], 0
    // Predicated region
    $region2: #{tpu_custom_call.1} parent=1 // pred_check
      _
    $region3: #{tpu_custom_call.1} parent=1 // pred_check_branch
      %16 = sbr.rel (0) target = $region5
    $region4: #{tpu_custom_call.1} parent=1 // pred_region
      _
    $region5: #{tpu_custom_call.1} parent=1 // pred_fallthru
      _
    // Predicated region
    $region6: #{tpu_custom_call.1} parent=1 // pred_check
      _
    $region7: #{tpu_custom_call.1} parent=1 // pred_check_branch
      %18 = sbr.rel (0) target = $region9
    $region8: #{tpu_custom_call.1} parent=1 // pred_region
      _
    $region9: #{tpu_custom_call.1} parent=1 // pred_fallthru
      _
    // Predicated region
    $region10: #{tpu_custom_call.1} parent=1 // pred_check
      _
    $region11: #{tpu_custom_call.1} parent=1 // pred_check_branch
      %20 = sbr.rel (0) target = $region13
    $region12: #{tpu_custom_call.1} parent=1 // pred_region
      _
    $region13: #{tpu_custom_call.1} parent=1 // pred_fallthru
      _
    // Predicated region
    $region14: #{tpu_custom_call.1} parent=1 // pred_check
      _
    $region15: #{tpu_custom_call.1} parent=1 // pred_check_branch
      %22 = sbr.rel (0) target = $region17
    $region16: #{tpu_custom_call.1} parent=1 // pred_region
      _
    $region17: #{tpu_custom_call.1} parent=1 // pred_fallthru
      _
    // Predicated region
    $region18: #{tpu_custom_call.1} parent=1 // pred_check
      _
    $region19: #{tpu_custom_call.1} parent=1 // pred_check_branch
      %24 = sbr.rel (0) target = $region21
    $region20: #{tpu_custom_call.1} parent=1 // pred_region
      _
    $region21: #{tpu_custom_call.1} parent=1 // pred_fallthru
      _
    // Predicated region
    $region22: #{tpu_custom_call.1} parent=1 // pred_check
      _
    $region23: #{tpu_custom_call.1} parent=1 // pred_check_branch
      %26 = sbr.rel (0) target = $region25
    $region24: #{tpu_custom_call.1} parent=1 // pred_region
      _
    $region25: #{tpu_custom_call.1} parent=1 // pred_fallthru
      _
    // Predicated region
    $region26: #{tpu_custom_call.1} parent=1 // pred_check
      _
    $region27: #{tpu_custom_call.1} parent=1 // pred_check_branch
      %28 = sbr.rel (0) target = $region29
    $region28: #{tpu_custom_call.1} parent=1 // pred_region
      _
    $region29: #{tpu_custom_call.1} parent=1 // pred_fallthru
      _
    %v29 = vld [vmem:[%s0] sm:$0xff]
    %v30 = vld [vmem:[%s0 + $0x8] sm:$0xff]
    %v31 = vld [vmem:[%s0 + $0x10] sm:$0xff]
    %v32 = vld [vmem:[%s0 + $0x18] sm:$0xff]
    %v33 = vld [vmem:[%s0 + $0x20] sm:$0xff]
    %v34 = vld [vmem:[%s0 + $0x28] sm:$0xff]
    %v35 = vld [vmem:[%s0 + $0x30] sm:$0xff]
    %v36 = vld [vmem:[%s0 + $0x38] sm:$0xff]
    %v37 = vld [vmem:[%s0 + $0x40] sm:$0xff]
    %v38 = vld [vmem:[%s0 + $0x48] sm:$0xff]
    %v39 = vld [vmem:[%s0 + $0x50] sm:$0xff]
    %v40 = vld [vmem:[%s0 + $0x58] sm:$0xff]
    %v41 = vld [vmem:[%s0 + $0x60] sm:$0xff]
    %v42 = vld [vmem:[%s0 + $0x68] sm:$0xff]
    %v43 = vld [vmem:[%s0 + $0x70] sm:$0xff]
    %v44 = vld [vmem:[%s0 + $0x78] sm:$0xff]
    %v45 = vld [vmem:[%s0 + $0x80] sm:$0xff]
    %v46 = vld [vmem:[%s0 + $0x88] sm:$0xff]
    %v47 = vld [vmem:[%s0 + $0x90] sm:$0xff]
    %v48 = vld [vmem:[%s0 + $0x98] sm:$0xff]
    %v49 = vld [vmem:[%s0 + $0xa0] sm:$0xff]
    %v50 = vld [vmem:[%s0 + $0xa8] sm:$0xff]
    %v51 = vld [vmem:[%s0 + $0xb0] sm:$0xff]
    %v52 = vld [vmem:[%s0 + $0xb8] sm:$0xff]
    %v53 = vld [vmem:[%s0 + $0xc0] sm:$0xff]
    %v54 = vld [vmem:[%s0 + $0xc8] sm:$0xff]
    %v55 = vld [vmem:[%s0 + $0xd0] sm:$0xff]
    %v56 = vld [vmem:[%s0 + $0xd8] sm:$0xff]
    %v57 = vld [vmem:[%s0 + $0xe0] sm:$0xff]
    %v58 = vld [vmem:[%s0 + $0xe8] sm:$0xff]
    %v59 = vld [vmem:[%s0 + $0xf0] sm:$0xff]
    %v60 = vld [vmem:[%s0 + $0xf8] sm:$0xff]
    %v61 = vld [vmem:[%s0 + $0x100] sm:$0xff]
    %v62 = vld [vmem:[%s0 + $0x108] sm:$0xff]
    %v63 = vld [vmem:[%s0 + $0x110] sm:$0xff]
    %v64 = vld [vmem:[%s0 + $0x118] sm:$0xff]
    %v65 = vld [vmem:[%s0 + $0x120] sm:$0xff]
    %v66 = vld [vmem:[%s0 + $0x128] sm:$0xff]
    %v67 = vld [vmem:[%s0 + $0x130] sm:$0xff]
    %v68 = vld [vmem:[%s0 + $0x138] sm:$0xff]
    %v69 = vld [vmem:[%s0 + $0x140] sm:$0xff]
    %v70 = vld [vmem:[%s0 + $0x148] sm:$0xff]
    %v71 = vld [vmem:[%s0 + $0x150] sm:$0xff]
    %v72 = vld [vmem:[%s0 + $0x158] sm:$0xff]
    %v73 = vld [vmem:[%s0 + $0x160] sm:$0xff]
    %v74 = vld [vmem:[%s0 + $0x168] sm:$0xff]
    %v75 = vld [vmem:[%s0 + $0x170] sm:$0xff]
    %v76 = vld [vmem:[%s0 + $0x178] sm:$0xff]
    %v77 = vld [vmem:[%s0 + $0x180] sm:$0xff]
    %v78 = vld [vmem:[%s0 + $0x188] sm:$0xff]
    %v79 = vld [vmem:[%s0 + $0x190] sm:$0xff]
    %v80 = vld [vmem:[%s0 + $0x198] sm:$0xff]
    %v81 = vld [vmem:[%s0 + $0x1a0] sm:$0xff]
    %v82 = vld [vmem:[%s0 + $0x1a8] sm:$0xff]
    %v83 = vld [vmem:[%s0 + $0x1b0] sm:$0xff]
    %v84 = vld [vmem:[%s0 + $0x1b8] sm:$0xff]
    %v85 = vld [vmem:[%s0 + $0x1c0] sm:$0xff]
    %v86 = vld [vmem:[%s0 + $0x1c8] sm:$0xff]
    %v87 = vld [vmem:[%s0 + $0x1d0] sm:$0xff]
    %v88 = vld [vmem:[%s0 + $0x1d8] sm:$0xff]
    %v89 = vld [vmem:[%s0 + $0x1e0] sm:$0xff]
    %v90 = vld [vmem:[%s0 + $0x1e8] sm:$0xff]
    %v91 = vld [vmem:[%s0 + $0x1f0] sm:$0xff]
    %v92 = vld [vmem:[%s0 + $0x1f8] sm:$0xff]
    %v93 = vld [vmem:[%s0 + $0x200] sm:$0xff]
    %v94 = vld [vmem:[%s0 + $0x208] sm:$0xff]
    %v95 = vld [vmem:[%s0 + $0x210] sm:$0xff]
    %v96 = vld [vmem:[%s0 + $0x218] sm:$0xff]
    %v97 = vld [vmem:[%s0 + $0x220] sm:$0xff]
    %v98 = vld [vmem:[%s0 + $0x228] sm:$0xff]
    %v99 = vld [vmem:[%s0 + $0x230] sm:$0xff]
    %v100 = vld [vmem:[%s0 + $0x238] sm:$0xff]
    %v101 = vld [vmem:[%s0 + $0x240] sm:$0xff]
    %v102 = vld [vmem:[%s0 + $0x248] sm:$0xff]
    %v103 = vld [vmem:[%s0 + $0x250] sm:$0xff]
    %v104 = vld [vmem:[%s0 + $0x258] sm:$0xff]
    %v105 = vld [vmem:[%s0 + $0x260] sm:$0xff]
    %v106 = vld [vmem:[%s0 + $0x268] sm:$0xff]
    %v107 = vld [vmem:[%s0 + $0x270] sm:$0xff]
    %v108 = vld [vmem:[%s0 + $0x278] sm:$0xff]
    %v109 = vld [vmem:[%s0 + $0x280] sm:$0xff]
    %v110 = vld [vmem:[%s0 + $0x288] sm:$0xff]
    %v111 = vld [vmem:[%s0 + $0x290] sm:$0xff]
    %v112 = vld [vmem:[%s0 + $0x298] sm:$0xff]
    %v113 = vld [vmem:[%s0 + $0x2a0] sm:$0xff]
    %v114 = vld [vmem:[%s0 + $0x2a8] sm:$0xff]
    %v115 = vld [vmem:[%s0 + $0x2b0] sm:$0xff]
    %v116 = vld [vmem:[%s0 + $0x2b8] sm:$0xff]
    %v117 = vld [vmem:[%s0 + $0x2c0] sm:$0xff]
    %v118 = vld [vmem:[%s0 + $0x2c8] sm:$0xff]
    %v119 = vld [vmem:[%s0 + $0x2d0] sm:$0xff]
    %v120 = vld [vmem:[%s0 + $0x2d8] sm:$0xff]
    %v121 = vld [vmem:[%s0 + $0x2e0] sm:$0xff]
    %v122 = vld [vmem:[%s0 + $0x2e8] sm:$0xff]
    %v123 = vld [vmem:[%s0 + $0x2f0] sm:$0xff]
    %v124 = vld [vmem:[%s0 + $0x2f8] sm:$0xff]
    %v125 = vld [vmem:[%s0 + $0x300] sm:$0xff]
    %v126 = vld [vmem:[%s0 + $0x308] sm:$0xff]
    %v127 = vld [vmem:[%s0 + $0x310] sm:$0xff]
    %v128 = vld [vmem:[%s0 + $0x318] sm:$0xff]
    %v129 = vld [vmem:[%s0 + $0x320] sm:$0xff]
    %v130 = vld [vmem:[%s0 + $0x328] sm:$0xff]
    %v131 = vld [vmem:[%s0 + $0x330] sm:$0xff]
    %v132 = vld [vmem:[%s0 + $0x338] sm:$0xff]
    %v133 = vld [vmem:[%s0 + $0x340] sm:$0xff]
    %v134 = vld [vmem:[%s0 + $0x348] sm:$0xff]
    %v135 = vld [vmem:[%s0 + $0x350] sm:$0xff]
    %v136 = vld [vmem:[%s0 + $0x358] sm:$0xff]
    %v137 = vld [vmem:[%s0 + $0x360] sm:$0xff]
    %v138 = vld [vmem:[%s0 + $0x368] sm:$0xff]
    %v139 = vld [vmem:[%s0 + $0x370] sm:$0xff]
    %v140 = vld [vmem:[%s0 + $0x378] sm:$0xff]
    %v141 = vld [vmem:[%s0 + $0x380] sm:$0xff]
    %v142 = vld [vmem:[%s0 + $0x388] sm:$0xff]
    %v143 = vld [vmem:[%s0 + $0x390] sm:$0xff]
    %v144 = vld [vmem:[%s0 + $0x398] sm:$0xff]
    %v145 = vld [vmem:[%s0 + $0x3a0] sm:$0xff]
    %v146 = vld [vmem:[%s0 + $0x3a8] sm:$0xff]
    %v147 = vld [vmem:[%s0 + $0x3b0] sm:$0xff]
    %v148 = vld [vmem:[%s0 + $0x3b8] sm:$0xff]
    %v149 = vld [vmem:[%s0 + $0x3c0] sm:$0xff]
    %v150 = vld [vmem:[%s0 + $0x3c8] sm:$0xff]
    %v151 = vld [vmem:[%s0 + $0x3d0] sm:$0xff]
    %v152 = vld [vmem:[%s0 + $0x3d8] sm:$0xff]
    %v153 = vld [vmem:[%s0 + $0x3e0] sm:$0xff]
    %v154 = vld [vmem:[%s0 + $0x3e8] sm:$0xff]
    %v155 = vld [vmem:[%s0 + $0x3f0] sm:$0xff]
    %v156 = vld [vmem:[%s0 + $0x3f8] sm:$0xff]
    %v157 = vld [vmem:[%s1] sm:$0xff]
    %v158 = vld [vmem:[%s1 + $0x8] sm:$0xff]
    %v159 = vld [vmem:[%s1 + $0x10] sm:$0xff]
    %v160 = vld [vmem:[%s1 + $0x18] sm:$0xff]
    %v161 = vld [vmem:[%s2] sm:$0xff]
    %v162 = vld [vmem:[%s2 + $0x8] sm:$0xff]
    %v163 = vld [vmem:[%s2 + $0x10] sm:$0xff]
    %v164 = vld [vmem:[%s2 + $0x18] sm:$0xff]
    %166 = vset.pattern.permute.xlu0 0
    %167 = vperm.xlu0 %166, %v161
    %v168 = vpop.permute.xlu0 %167
    %171 = vset.pattern.permute.xlu0 0
    %172 = vperm.xlu0 %171, %v162
    %v173 = vpop.permute.xlu0 %172
    %176 = vset.pattern.permute.xlu0 0
    %177 = vperm.xlu0 %176, %v163
    %v178 = vpop.permute.xlu0 %177
    %181 = vset.pattern.permute.xlu0 0
    %182 = vperm.xlu0 %181, %v164
    %v183 = vpop.permute.xlu0 %182
    %vm185 = vcmask 113664
    %v187 = vsel %vm185, %v157, 0
    %v190 = vsel %vm185, %v158, 0
    %v193 = vsel %vm185, %v159, 0
    %v196 = vsel %vm185, %v160, 0
    %v199 = vsel %vm185, %v29, 0
    %v202 = vsel %vm185, %v30, 0
    %v205 = vsel %vm185, %v31, 0
    %v208 = vsel %vm185, %v32, 0
    %v211 = vsel %vm185, %v33, 0
    %v214 = vsel %vm185, %v34, 0
    %v217 = vsel %vm185, %v35, 0
    %v220 = vsel %vm185, %v36, 0
    %v223 = vsel %vm185, %v37, 0
    %v226 = vsel %vm185, %v38, 0
    %v229 = vsel %vm185, %v39, 0
    %v232 = vsel %vm185, %v40, 0
    %v235 = vsel %vm185, %v41, 0
    %v238 = vsel %vm185, %v42, 0
    %v241 = vsel %vm185, %v43, 0
    %v244 = vsel %vm185, %v44, 0
    %v247 = vsel %vm185, %v45, 0
    %v250 = vsel %vm185, %v46, 0
    %v253 = vsel %vm185, %v47, 0
    %v256 = vsel %vm185, %v48, 0
    %v259 = vsel %vm185, %v49, 0
    %v262 = vsel %vm185, %v50, 0
    %v265 = vsel %vm185, %v51, 0
    %v268 = vsel %vm185, %v52, 0
    %v271 = vsel %vm185, %v53, 0
    %v274 = vsel %vm185, %v54, 0
    %v277 = vsel %vm185, %v55, 0
    %v280 = vsel %vm185, %v56, 0
    %v283 = vsel %vm185, %v57, 0
    %v286 = vsel %vm185, %v58, 0
    %v289 = vsel %vm185, %v59, 0
    %v292 = vsel %vm185, %v60, 0
    %v295 = vsel %vm185, %v61, 0
    %v298 = vsel %vm185, %v62, 0
    %v301 = vsel %vm185, %v63, 0
    %v304 = vsel %vm185, %v64, 0
    %v307 = vsel %vm185, %v65, 0
    %v310 = vsel %vm185, %v66, 0
    %v313 = vsel %vm185, %v67, 0
    %v316 = vsel %vm185, %v68, 0
    %v319 = vsel %vm185, %v69, 0
    %v322 = vsel %vm185, %v70, 0
    %v325 = vsel %vm185, %v71, 0
    %v328 = vsel %vm185, %v72, 0
    %v331 = vsel %vm185, %v73, 0
    %v334 = vsel %vm185, %v74, 0
    %v337 = vsel %vm185, %v75, 0
    %v340 = vsel %vm185, %v76, 0
    %v343 = vsel %vm185, %v77, 0
    %v346 = vsel %vm185, %v78, 0
    %v349 = vsel %vm185, %v79, 0
    %v352 = vsel %vm185, %v80, 0
    %v355 = vsel %vm185, %v81, 0
    %v358 = vsel %vm185, %v82, 0
    %v361 = vsel %vm185, %v83, 0
    %v364 = vsel %vm185, %v84, 0
    %v367 = vsel %vm185, %v85, 0
    %v370 = vsel %vm185, %v86, 0
    %v373 = vsel %vm185, %v87, 0
    %v376 = vsel %vm185, %v88, 0
    %v379 = vsel %vm185, %v89, 0
    %v382 = vsel %vm185, %v90, 0
    %v385 = vsel %vm185, %v91, 0
    %v388 = vsel %vm185, %v92, 0
    %v391 = vsel %vm185, %v93, 0
    %v394 = vsel %vm185, %v94, 0
    %v397 = vsel %vm185, %v95, 0
    %v400 = vsel %vm185, %v96, 0
    %v403 = vsel %vm185, %v97, 0
    %v406 = vsel %vm185, %v98, 0
    %v409 = vsel %vm185, %v99, 0
    %v412 = vsel %vm185, %v100, 0
    %v415 = vsel %vm185, %v101, 0
    %v418 = vsel %vm185, %v102, 0
    %v421 = vsel %vm185, %v103, 0
    %v424 = vsel %vm185, %v104, 0
    %v427 = vsel %vm185, %v105, 0
    %v430 = vsel %vm185, %v106, 0
    %v433 = vsel %vm185, %v107, 0
    %v436 = vsel %vm185, %v108, 0
    %v439 = vsel %vm185, %v109, 0
    %v442 = vsel %vm185, %v110, 0
    %v445 = vsel %vm185, %v111, 0
    %v448 = vsel %vm185, %v112, 0
    %v451 = vsel %vm185, %v113, 0
    %v454 = vsel %vm185, %v114, 0
    %v457 = vsel %vm185, %v115, 0
    %v460 = vsel %vm185, %v116, 0
    %v463 = vsel %vm185, %v117, 0
    %v466 = vsel %vm185, %v118, 0
    %v469 = vsel %vm185, %v119, 0
    %v472 = vsel %vm185, %v120, 0
    %v475 = vsel %vm185, %v121, 0
    %v478 = vsel %vm185, %v122, 0
    %v481 = vsel %vm185, %v123, 0
    %v484 = vsel %vm185, %v124, 0
    %v487 = vsel %vm185, %v125, 0
    %v490 = vsel %vm185, %v126, 0
    %v493 = vsel %vm185, %v127, 0
    %v496 = vsel %vm185, %v128, 0
    %v499 = vsel %vm185, %v129, 0
    %v502 = vsel %vm185, %v130, 0
    %v505 = vsel %vm185, %v131, 0
    %v508 = vsel %vm185, %v132, 0
    %v511 = vsel %vm185, %v133, 0
    %v514 = vsel %vm185, %v134, 0
    %v517 = vsel %vm185, %v135, 0
    %v520 = vsel %vm185, %v136, 0
    %v523 = vsel %vm185, %v137, 0
    %v526 = vsel %vm185, %v138, 0
    %v529 = vsel %vm185, %v139, 0
    %v532 = vsel %vm185, %v140, 0
    %v535 = vsel %vm185, %v141, 0
    %v538 = vsel %vm185, %v142, 0
    %v541 = vsel %vm185, %v143, 0
    %v544 = vsel %vm185, %v144, 0
    %v547 = vsel %vm185, %v145, 0
    %v550 = vsel %vm185, %v146, 0
    %v553 = vsel %vm185, %v147, 0
    %v556 = vsel %vm185, %v148, 0
    %v559 = vsel %vm185, %v149, 0
    %v562 = vsel %vm185, %v150, 0
    %v565 = vsel %vm185, %v151, 0
    %v568 = vsel %vm185, %v152, 0
    %v571 = vsel %vm185, %v153, 0
    %v574 = vsel %vm185, %v154, 0
    %v577 = vsel %vm185, %v155, 0
    %v580 = vsel %vm185, %v156, 0
    %582 = vmatprep.subr.mxu0 0.0
    %583 = vmatpush1.xpose.msra.mxu0 %v199
    %584 = vmatprep.subr.mxu0 0.0
    %585 = vmatpush1.xpose.msra.mxu0 %v202
    %586 = vmatprep.subr.mxu0 0.0
    %587 = vmatpush1.xpose.msra.mxu0 %v205
    %588 = vmatprep.subr.mxu0 0.0
    %589 = vmatpush1.xpose.msra.mxu0 %v208
    %590 = vmatprep.subr.mxu0 0.0
    %591 = vmatpush1.xpose.msra.mxu0 %v211
    %592 = vmatprep.subr.mxu0 0.0
    %593 = vmatpush1.xpose.msra.mxu0 %v214
    %594 = vmatprep.subr.mxu0 0.0
    %595 = vmatpush1.xpose.msra.mxu0 %v217
    %596 = vmatprep.subr.mxu0 0.0
    %597 = vmatpush1.xpose.msra.mxu0 %v220
    %598 = vmatprep.subr.mxu0 0.0
    %599 = vmatpush1.xpose.msra.mxu0 %v223
    %600 = vmatprep.subr.mxu0 0.0
    %601 = vmatpush1.xpose.msra.mxu0 %v226
    %602 = vmatprep.subr.mxu0 0.0
    %603 = vmatpush1.xpose.msra.mxu0 %v229
    %604 = vmatprep.subr.mxu0 0.0
    %605 = vmatpush1.xpose.msra.mxu0 %v232
    %606 = vmatprep.subr.mxu0 0.0
    %607 = vmatpush1.xpose.msra.mxu0 %v235
    %608 = vmatprep.subr.mxu0 0.0
    %609 = vmatpush1.xpose.msra.mxu0 %v238
    %610 = vmatprep.subr.mxu0 0.0
    %611 = vmatpush1.xpose.msra.mxu0 %v241
    %612 = vmatprep.subr.mxu0 0.0
    %613 = vmatpush1.xpose.msra.mxu0 %v244
    %614 = vmatprep.subr.mxu0 0.0
    %615 = vmatpush1.xpose.msra.mxu0 %v247
    %616 = vmatprep.subr.mxu0 0.0
    %617 = vmatpush1.xpose.msra.mxu0 %v250
    %618 = vmatprep.subr.mxu0 0.0
    %619 = vmatpush1.xpose.msra.mxu0 %v253
    %620 = vmatprep.subr.mxu0 0.0
    %621 = vmatpush1.xpose.msra.mxu0 %v256
    %622 = vmatprep.subr.mxu0 0.0
    %623 = vmatpush1.xpose.msra.mxu0 %v259
    %624 = vmatprep.subr.mxu0 0.0
    %625 = vmatpush1.xpose.msra.mxu0 %v262
    %626 = vmatprep.subr.mxu0 0.0
    %627 = vmatpush1.xpose.msra.mxu0 %v265
    %628 = vmatprep.subr.mxu0 0.0
    %629 = vmatpush1.xpose.msra.mxu0 %v268
    %630 = vmatprep.subr.mxu0 0.0
    %631 = vmatpush1.xpose.msra.mxu0 %v271
    %632 = vmatprep.subr.mxu0 0.0
    %633 = vmatpush1.xpose.msra.mxu0 %v274
    %634 = vmatprep.subr.mxu0 0.0
    %635 = vmatpush1.xpose.msra.mxu0 %v277
    %636 = vmatprep.subr.mxu0 0.0
    %637 = vmatpush1.xpose.msra.mxu0 %v280
    %638 = vmatprep.subr.mxu0 0.0
    %639 = vmatpush1.xpose.msra.mxu0 %v283
    %640 = vmatprep.subr.mxu0 0.0
    %641 = vmatpush1.xpose.msra.mxu0 %v286
    %642 = vmatprep.subr.mxu0 0.0
    %643 = vmatpush1.xpose.msra.mxu0 %v289
    %644 = vmatprep.subr.mxu0 0.0
    %645 = vmatpush1.xpose.msra.mxu0 %v292
    %646 = vmatprep.mubr.f32.mxu0 0.0
    %647 = vmatmul.mubr.f32.gmra.mrb[0].mxu0 %v187
    %v648 = vpop.f32.mrb[0].mxu0
    %v649 = vadd.f32 %v168, %v648
    %v650 = vpop.f32.mrb[0].mxu0
    %v651 = vadd.f32 %v168, %v650
    %652 = vmatprep.mubr.f32.mxu0 0.0
    %653 = vmatmul.mubr.f32.gmra.mrb[0].mxu0 %v190
    %v654 = vpop.f32.mrb[0].mxu0
    %v655 = vadd.f32 %v173, %v654
    %v656 = vpop.f32.mrb[0].mxu0
    %v657 = vadd.f32 %v173, %v656
    %658 = vmatprep.mubr.f32.mxu0 0.0
    %659 = vmatmul.mubr.f32.gmra.mrb[0].mxu0 %v193
    %v660 = vpop.f32.mrb[0].mxu0
    %v661 = vadd.f32 %v178, %v660
    %v662 = vpop.f32.mrb[0].mxu0
    %v663 = vadd.f32 %v178, %v662
    %664 = vmatprep.mubr.f32.mxu0 0.0
    %665 = vmatmul.mubr.f32.gmra.mrb[0].mxu0 %v196
    %v666 = vpop.f32.mrb[0].mxu0
    %v667 = vadd.f32 %v183, %v666
    %v668 = vpop.f32.mrb[0].mxu0
    %v669 = vadd.f32 %v183, %v668
    %670 = vdwg.mxu0
    %671 = vmatprep.subr.mxu0 0.0
    %672 = vmatpush1.xpose.msra.mxu0 %v295
    %673 = vmatprep.subr.mxu0 0.0
    %674 = vmatpush1.xpose.msra.mxu0 %v298
    %675 = vmatprep.subr.mxu0 0.0
    %676 = vmatpush1.xpose.msra.mxu0 %v301
    %677 = vmatprep.subr.mxu0 0.0
    %678 = vmatpush1.xpose.msra.mxu0 %v304
    %679 = vmatprep.subr.mxu0 0.0
    %680 = vmatpush1.xpose.msra.mxu0 %v307
    %681 = vmatprep.subr.mxu0 0.0
    %682 = vmatpush1.xpose.msra.mxu0 %v310
    %683 = vmatprep.subr.mxu0 0.0
    %684 = vmatpush1.xpose.msra.mxu0 %v313
    %685 = vmatprep.subr.mxu0 0.0
    %686 = vmatpush1.xpose.msra.mxu0 %v316
    %687 = vmatprep.subr.mxu0 0.0
    %688 = vmatpush1.xpose.msra.mxu0 %v319
    %689 = vmatprep.subr.mxu0 0.0
    %690 = vmatpush1.xpose.msra.mxu0 %v322
    %691 = vmatprep.subr.mxu0 0.0
    %692 = vmatpush1.xpose.msra.mxu0 %v325
    %693 = vmatprep.subr.mxu0 0.0
    %694 = vmatpush1.xpose.msra.mxu0 %v328
    %695 = vmatprep.subr.mxu0 0.0
    %696 = vmatpush1.xpose.msra.mxu0 %v331
    %697 = vmatprep.subr.mxu0 0.0
    %698 = vmatpush1.xpose.msra.mxu0 %v334
    %699 = vmatprep.subr.mxu0 0.0
    %700 = vmatpush1.xpose.msra.mxu0 %v337
    %701 = vmatprep.subr.mxu0 0.0
    %702 = vmatpush1.xpose.msra.mxu0 %v340
    %703 = vmatprep.subr.mxu0 0.0
    %704 = vmatpush1.xpose.msra.mxu0 %v343
    %705 = vmatprep.subr.mxu0 0.0
    %706 = vmatpush1.xpose.msra.mxu0 %v346
    %707 = vmatprep.subr.mxu0 0.0
    %708 = vmatpush1.xpose.msra.mxu0 %v349
    %709 = vmatprep.subr.mxu0 0.0
    %710 = vmatpush1.xpose.msra.mxu0 %v352
    %711 = vmatprep.subr.mxu0 0.0
    %712 = vmatpush1.xpose.msra.mxu0 %v355
    %713 = vmatprep.subr.mxu0 0.0
    %714 = vmatpush1.xpose.msra.mxu0 %v358
    %715 = vmatprep.subr.mxu0 0.0
    %716 = vmatpush1.xpose.msra.mxu0 %v361
    %717 = vmatprep.subr.mxu0 0.0
    %718 = vmatpush1.xpose.msra.mxu0 %v364
    %719 = vmatprep.subr.mxu0 0.0
    %720 = vmatpush1.xpose.msra.mxu0 %v367
    %721 = vmatprep.subr.mxu0 0.0
    %722 = vmatpush1.xpose.msra.mxu0 %v370
    %723 = vmatprep.subr.mxu0 0.0
    %724 = vmatpush1.xpose.msra.mxu0 %v373
    %725 = vmatprep.subr.mxu0 0.0
    %726 = vmatpush1.xpose.msra.mxu0 %v376
    %727 = vmatprep.subr.mxu0 0.0
    %728 = vmatpush1.xpose.msra.mxu0 %v379
    %729 = vmatprep.subr.mxu0 0.0
    %730 = vmatpush1.xpose.msra.mxu0 %v382
    %731 = vmatprep.subr.mxu0 0.0
    %732 = vmatpush1.xpose.msra.mxu0 %v385
    %733 = vmatprep.subr.mxu0 0.0
    %734 = vmatpush1.xpose.msra.mxu0 %v388
    %735 = vmatprep.mubr.f32.mxu0 0.0
    %736 = vmatmul.mubr.f32.gmra.mrb[0].mxu0 %v187
    %v737 = vpop.f32.mrb[0].mxu0
    %v738 = vadd.f32 %v168, %v737
    %v739 = vpop.f32.mrb[0].mxu0
    %v740 = vadd.f32 %v168, %v739
    %741 = vmatprep.mubr.f32.mxu0 0.0
    %742 = vmatmul.mubr.f32.gmra.mrb[0].mxu0 %v190
    %v743 = vpop.f32.mrb[0].mxu0
    %v744 = vadd.f32 %v173, %v743
    %v745 = vpop.f32.mrb[0].mxu0
    %v746 = vadd.f32 %v173, %v745
    %747 = vmatprep.mubr.f32.mxu0 0.0
    %748 = vmatmul.mubr.f32.gmra.mrb[0].mxu0 %v193
    %v749 = vpop.f32.mrb[0].mxu0
    %v750 = vadd.f32 %v178, %v749
    %v751 = vpop.f32.mrb[0].mxu0
    %v752 = vadd.f32 %v178, %v751
    %753 = vmatprep.mubr.f32.mxu0 0.0
    %754 = vmatmul.mubr.f32.gmra.mrb[0].mxu0 %v196
    %v755 = vpop.f32.mrb[0].mxu0
    %v756 = vadd.f32 %v183, %v755
    %v757 = vpop.f32.mrb[0].mxu0
    %v758 = vadd.f32 %v183, %v757
    %759 = vdwg.mxu0
    %760 = vmatprep.subr.mxu0 0.0
    %761 = vmatpush1.xpose.msra.mxu0 %v391
    %762 = vmatprep.subr.mxu0 0.0
    %763 = vmatpush1.xpose.msra.mxu0 %v394
    %764 = vmatprep.subr.mxu0 0.0
    %765 = vmatpush1.xpose.msra.mxu0 %v397
    %766 = vmatprep.subr.mxu0 0.0
    %767 = vmatpush1.xpose.msra.mxu0 %v400
    %768 = vmatprep.subr.mxu0 0.0
    %769 = vmatpush1.xpose.msra.mxu0 %v403
    %770 = vmatprep.subr.mxu0 0.0
    %771 = vmatpush1.xpose.msra.mxu0 %v406
    %772 = vmatprep.subr.mxu0 0.0
    %773 = vmatpush1.xpose.msra.mxu0 %v409
    %774 = vmatprep.subr.mxu0 0.0
    %775 = vmatpush1.xpose.msra.mxu0 %v412
    %776 = vmatprep.subr.mxu0 0.0
    %777 = vmatpush1.xpose.msra.mxu0 %v415
    %778 = vmatprep.subr.mxu0 0.0
    %779 = vmatpush1.xpose.msra.mxu0 %v418
    %780 = vmatprep.subr.mxu0 0.0
    %781 = vmatpush1.xpose.msra.mxu0 %v421
    %782 = vmatprep.subr.mxu0 0.0
    %783 = vmatpush1.xpose.msra.mxu0 %v424
    %784 = vmatprep.subr.mxu0 0.0
    %785 = vmatpush1.xpose.msra.mxu0 %v427
    %786 = vmatprep.subr.mxu0 0.0
    %787 = vmatpush1.xpose.msra.mxu0 %v430
    %788 = vmatprep.subr.mxu0 0.0
    %789 = vmatpush1.xpose.msra.mxu0 %v433
    %790 = vmatprep.subr.mxu0 0.0
    %791 = vmatpush1.xpose.msra.mxu0 %v436
    %792 = vmatprep.subr.mxu0 0.0
    %793 = vmatpush1.xpose.msra.mxu0 %v439
    %794 = vmatprep.subr.mxu0 0.0
    %795 = vmatpush1.xpose.msra.mxu0 %v442
    %796 = vmatprep.subr.mxu0 0.0
    %797 = vmatpush1.xpose.msra.mxu0 %v445
    %798 = vmatprep.subr.mxu0 0.0
    %799 = vmatpush1.xpose.msra.mxu0 %v448
    %800 = vmatprep.subr.mxu0 0.0
    %801 = vmatpush1.xpose.msra.mxu0 %v451
    %802 = vmatprep.subr.mxu0 0.0
    %803 = vmatpush1.xpose.msra.mxu0 %v454
    %804 = vmatprep.subr.mxu0 0.0
    %805 = vmatpush1.xpose.msra.mxu0 %v457
    %806 = vmatprep.subr.mxu0 0.0
    %807 = vmatpush1.xpose.msra.mxu0 %v460
    %808 = vmatprep.subr.mxu0 0.0
    %809 = vmatpush1.xpose.msra.mxu0 %v463
    %810 = vmatprep.subr.mxu0 0.0
    %811 = vmatpush1.xpose.msra.mxu0 %v466
    %812 = vmatprep.subr.mxu0 0.0
    %813 = vmatpush1.xpose.msra.mxu0 %v469
    %814 = vmatprep.subr.mxu0 0.0
    %815 = vmatpush1.xpose.msra.mxu0 %v472
    %816 = vmatprep.subr.mxu0 0.0
    %817 = vmatpush1.xpose.msra.mxu0 %v475
    %818 = vmatprep.subr.mxu0 0.0
    %819 = vmatpush1.xpose.msra.mxu0 %v478
    %820 = vmatprep.subr.mxu0 0.0
    %821 = vmatpush1.xpose.msra.mxu0 %v481
    %822 = vmatprep.subr.mxu0 0.0
    %823 = vmatpush1.xpose.msra.mxu0 %v484
    %824 = vmatprep.mubr.f32.mxu0 0.0
    %825 = vmatmul.mubr.f32.gmra.mrb[0].mxu0 %v187
    %v826 = vpop.f32.mrb[0].mxu0
    %v827 = vadd.f32 %v168, %v826
    %v828 = vpop.f32.mrb[0].mxu0
    %v829 = vadd.f32 %v168, %v828
    %830 = vmatprep.mubr.f32.mxu0 0.0
    %831 = vmatmul.mubr.f32.gmra.mrb[0].mxu0 %v190
    %v832 = vpop.f32.mrb[0].mxu0
    %v833 = vadd.f32 %v173, %v832
    %v834 = vpop.f32.mrb[0].mxu0
    %v835 = vadd.f32 %v173, %v834
    %836 = vmatprep.mubr.f32.mxu0 0.0
    %837 = vmatmul.mubr.f32.gmra.mrb[0].mxu0 %v193
    %v838 = vpop.f32.mrb[0].mxu0
    %v839 = vadd.f32 %v178, %v838
    %v840 = vpop.f32.mrb[0].mxu0
    %v841 = vadd.f32 %v178, %v840
    %842 = vmatprep.mubr.f32.mxu0 0.0
    %843 = vmatmul.mubr.f32.gmra.mrb[0].mxu0 %v196
    %v844 = vpop.f32.mrb[0].mxu0
    %v845 = vadd.f32 %v183, %v844
    %v846 = vpop.f32.mrb[0].mxu0
    %v847 = vadd.f32 %v183, %v846
    %848 = vdwg.mxu0
    %849 = vmatprep.subr.mxu0 0.0
    %850 = vmatpush1.xpose.msra.mxu0 %v487
    %851 = vmatprep.subr.mxu0 0.0
    %852 = vmatpush1.xpose.msra.mxu0 %v490
    %853 = vmatprep.subr.mxu0 0.0
    %854 = vmatpush1.xpose.msra.mxu0 %v493
    %855 = vmatprep.subr.mxu0 0.0
    %856 = vmatpush1.xpose.msra.mxu0 %v496
    %857 = vmatprep.subr.mxu0 0.0
    %858 = vmatpush1.xpose.msra.mxu0 %v499
    %859 = vmatprep.subr.mxu0 0.0
    %860 = vmatpush1.xpose.msra.mxu0 %v502
    %861 = vmatprep.subr.mxu0 0.0
    %862 = vmatpush1.xpose.msra.mxu0 %v505
    %863 = vmatprep.subr.mxu0 0.0
    %864 = vmatpush1.xpose.msra.mxu0 %v508
    %865 = vmatprep.subr.mxu0 0.0
    %866 = vmatpush1.xpose.msra.mxu0 %v511
    %867 = vmatprep.subr.mxu0 0.0
    %868 = vmatpush1.xpose.msra.mxu0 %v514
    %869 = vmatprep.subr.mxu0 0.0
    %870 = vmatpush1.xpose.msra.mxu0 %v517
    %871 = vmatprep.subr.mxu0 0.0
    %872 = vmatpush1.xpose.msra.mxu0 %v520
    %873 = vmatprep.subr.mxu0 0.0
    %874 = vmatpush1.xpose.msra.mxu0 %v523
    %875 = vmatprep.subr.mxu0 0.0
    %876 = vmatpush1.xpose.msra.mxu0 %v526
    %877 = vmatprep.subr.mxu0 0.0
    %878 = vmatpush1.xpose.msra.mxu0 %v529
    %879 = vmatprep.subr.mxu0 0.0
    %880 = vmatpush1.xpose.msra.mxu0 %v532
    %881 = vmatprep.subr.mxu0 0.0
    %882 = vmatpush1.xpose.msra.mxu0 %v535
    %883 = vmatprep.subr.mxu0 0.0
    %884 = vmatpush1.xpose.msra.mxu0 %v538
    %885 = vmatprep.subr.mxu0 0.0
    %886 = vmatpush1.xpose.msra.mxu0 %v541
    %887 = vmatprep.subr.mxu0 0.0
    %888 = vmatpush1.xpose.msra.mxu0 %v544
    %889 = vmatprep.subr.mxu0 0.0
    %890 = vmatpush1.xpose.msra.mxu0 %v547
    %891 = vmatprep.subr.mxu0 0.0
    %892 = vmatpush1.xpose.msra.mxu0 %v550
    %893 = vmatprep.subr.mxu0 0.0
    %894 = vmatpush1.xpose.msra.mxu0 %v553
    %895 = vmatprep.subr.mxu0 0.0
    %896 = vmatpush1.xpose.msra.mxu0 %v556
    %897 = vmatprep.subr.mxu0 0.0
    %898 = vmatpush1.xpose.msra.mxu0 %v559
    %899 = vmatprep.subr.mxu0 0.0
    %900 = vmatpush1.xpose.msra.mxu0 %v562
    %901 = vmatprep.subr.mxu0 0.0
    %902 = vmatpush1.xpose.msra.mxu0 %v565
    %903 = vmatprep.subr.mxu0 0.0
    %904 = vmatpush1.xpose.msra.mxu0 %v568
    %905 = vmatprep.subr.mxu0 0.0
    %906 = vmatpush1.xpose.msra.mxu0 %v571
    %907 = vmatprep.subr.mxu0 0.0
    %908 = vmatpush1.xpose.msra.mxu0 %v574
    %909 = vmatprep.subr.mxu0 0.0
    %910 = vmatpush1.xpose.msra.mxu0 %v577
    %911 = vmatprep.subr.mxu0 0.0
    %912 = vmatpush1.xpose.msra.mxu0 %v580
    %913 = vmatprep.mubr.f32.mxu0 0.0
    %914 = vmatmul.mubr.f32.gmra.mrb[0].mxu0 %v187
    %v915 = vpop.f32.mrb[0].mxu0
    %v916 = vadd.f32 %v168, %v915
    %v917 = vpop.f32.mrb[0].mxu0
    %v918 = vadd.f32 %v168, %v917
    %919 = vmatprep.mubr.f32.mxu0 0.0
    %920 = vmatmul.mubr.f32.gmra.mrb[0].mxu0 %v190
    %v921 = vpop.f32.mrb[0].mxu0
    %v922 = vadd.f32 %v173, %v921
    %v923 = vpop.f32.mrb[0].mxu0
    %v924 = vadd.f32 %v173, %v923
    %925 = vmatprep.mubr.f32.mxu0 0.0
    %926 = vmatmul.mubr.f32.gmra.mrb[0].mxu0 %v193
    %v927 = vpop.f32.mrb[0].mxu0
    %v928 = vadd.f32 %v178, %v927
    %v929 = vpop.f32.mrb[0].mxu0
    %v930 = vadd.f32 %v178, %v929
    %931 = vmatprep.mubr.f32.mxu0 0.0
    %932 = vmatmul.mubr.f32.gmra.mrb[0].mxu0 %v196
    %v933 = vpop.f32.mrb[0].mxu0
    %v934 = vadd.f32 %v183, %v933
    %v935 = vpop.f32.mrb[0].mxu0
    %v936 = vadd.f32 %v183, %v935
    %937 = vdwg.mxu0
    %v938 = vmax.f32 %v649, 0.0
    %v939 = vmax.f32 %v651, 0.0
    %v940 = vmax.f32 %v738, 0.0
    %v941 = vmax.f32 %v740, 0.0
    %v942 = vmax.f32 %v827, 0.0
    %v943 = vmax.f32 %v829, 0.0
    %v944 = vmax.f32 %v916, 0.0
    %v945 = vmax.f32 %v918, 0.0
    %v946 = vmax.f32 %v655, 0.0
    %v947 = vmax.f32 %v657, 0.0
    %v948 = vmax.f32 %v744, 0.0
    %v949 = vmax.f32 %v746, 0.0
    %v950 = vmax.f32 %v833, 0.0
    %v951 = vmax.f32 %v835, 0.0
    %v952 = vmax.f32 %v922, 0.0
    %v953 = vmax.f32 %v924, 0.0
    %v954 = vmax.f32 %v661, 0.0
    %v955 = vmax.f32 %v663, 0.0
    %v956 = vmax.f32 %v750, 0.0
    %v957 = vmax.f32 %v752, 0.0
    %v958 = vmax.f32 %v839, 0.0
    %v959 = vmax.f32 %v841, 0.0
    %v960 = vmax.f32 %v928, 0.0
    %v961 = vmax.f32 %v930, 0.0
    %v962 = vmax.f32 %v667, 0.0
    %v963 = vmax.f32 %v669, 0.0
    %v964 = vmax.f32 %v756, 0.0
    %v965 = vmax.f32 %v758, 0.0
    %v966 = vmax.f32 %v845, 0.0
    %v967 = vmax.f32 %v847, 0.0
    %v968 = vmax.f32 %v934, 0.0
    %v969 = vmax.f32 %v936, 0.0
    %v970 = vld [vmem:[%s3] sm:$0xff]
    %v971 = vld [vmem:[%s3 + $0x8] sm:$0x3]
    %v972 = vld [vmem:[%s4] sm:$0xff]
    %v973 = vld [vmem:[%s4 + $0x8] sm:$0x3]
    %975 = vset.pattern.permute.xlu0 0
    %976 = vperm.xlu0 %975, %v972
    %v977 = vpop.permute.xlu0 %976
    %980 = vset.pattern.permute.xlu0 0
    %981 = vperm.xlu0 %980, %v973
    %v982 = vpop.permute.xlu0 %981
    %vm984 = vcmask 261120
    %v986 = vsel %vm984, %v970, 0
    %v989 = vsel %vm984, %v971, 0
    %991 = vmatprep.subr.mxu0 %v939
    %992 = vmatpush1.msra.mxu0 %v938
    %993 = vmatprep.subr.mxu0 %v947
    %994 = vmatpush1.msra.mxu0 %v946
    %995 = vmatprep.subr.mxu0 %v955
    %996 = vmatpush1.msra.mxu0 %v954
    %997 = vmatprep.subr.mxu0 %v963
    %998 = vmatpush1.msra.mxu0 %v962
    %999 = vmatprep.subr.mxu0 0.0
    %1000 = vmatpush1.msra.mxu0 0.0
    %1001 = vmatprep.subr.mxu0 0.0
    %1002 = vmatpush1.msra.mxu0 0.0
    %1003 = vmatprep.subr.mxu0 0.0
    %1004 = vmatpush1.msra.mxu0 0.0
    %1005 = vmatprep.subr.mxu0 0.0
    %1006 = vmatpush1.msra.mxu0 0.0
    %1007 = vmatprep.subr.mxu0 0.0
    %1008 = vmatpush1.msra.mxu0 0.0
    %1009 = vmatprep.subr.mxu0 0.0
    %1010 = vmatpush1.msra.mxu0 0.0
    %1011 = vmatprep.subr.mxu0 0.0
    %1012 = vmatpush1.msra.mxu0 0.0
    %1013 = vmatprep.subr.mxu0 0.0
    %1014 = vmatpush1.msra.mxu0 0.0
    %1015 = vmatprep.subr.mxu0 0.0
    %1016 = vmatpush1.msra.mxu0 0.0
    %1017 = vmatprep.subr.mxu0 0.0
    %1018 = vmatpush1.msra.mxu0 0.0
    %1019 = vmatprep.subr.mxu0 0.0
    %1020 = vmatpush1.msra.mxu0 0.0
    %1021 = vmatprep.subr.mxu0 0.0
    %1022 = vmatpush1.msra.mxu0 0.0
    %1023 = vmatprep.subr.mxu0 0.0
    %1024 = vmatpush1.msra.mxu0 0.0
    %1025 = vmatprep.subr.mxu0 0.0
    %1026 = vmatpush1.msra.mxu0 0.0
    %1027 = vmatprep.subr.mxu0 0.0
    %1028 = vmatpush1.msra.mxu0 0.0
    %1029 = vmatprep.subr.mxu0 0.0
    %1030 = vmatpush1.msra.mxu0 0.0
    %1031 = vmatprep.subr.mxu0 0.0
    %1032 = vmatpush1.msra.mxu0 0.0
    %1033 = vmatprep.subr.mxu0 0.0
    %1034 = vmatpush1.msra.mxu0 0.0
    %1035 = vmatprep.subr.mxu0 0.0
    %1036 = vmatpush1.msra.mxu0 0.0
    %1037 = vmatprep.subr.mxu0 0.0
    %1038 = vmatpush1.msra.mxu0 0.0
    %1039 = vmatprep.subr.mxu0 0.0
    %1040 = vmatpush1.msra.mxu0 0.0
    %1041 = vmatprep.subr.mxu0 0.0
    %1042 = vmatpush1.msra.mxu0 0.0
    %1043 = vmatprep.subr.mxu0 0.0
    %1044 = vmatpush1.msra.mxu0 0.0
    %1045 = vmatprep.subr.mxu0 0.0
    %1046 = vmatpush1.msra.mxu0 0.0
    %1047 = vmatprep.subr.mxu0 0.0
    %1048 = vmatpush1.msra.mxu0 0.0
    %1049 = vmatprep.subr.mxu0 0.0
    %1050 = vmatpush1.msra.mxu0 0.0
    %1051 = vmatprep.subr.mxu0 0.0
    %1052 = vmatpush1.msra.mxu0 0.0
    %1053 = vmatprep.subr.mxu0 0.0
    %1054 = vmatpush1.msra.mxu0 0.0
    %1055 = vmatprep.mubr.f32.mxu0 0.0
    %1056 = vmatmul.mubr.f32.gmra.mrb[0].mxu0 %v986
    %v1057 = vpop.f32.mrb[0].mxu0
    %v1058 = vadd.f32 %v977, %v1057
    %v1059 = vpop.f32.mrb[0].mxu0
    %v1060 = vadd.f32 %v977, %v1059
    %1061 = vmatprep.mubr.f32.mxu0 0.0
    %1062 = vmatmul.mubr.f32.gmra.mrb[0].mxu0 %v989
    %v1063 = vpop.f32.mrb[0].mxu0
    %v1064 = vadd.f32 %v982, %v1063
    %v1065 = vpop.f32.mrb[0].mxu0
    %v1066 = vadd.f32 %v982, %v1065
    %1067 = vdwg.mxu0
    %1068 = vmatprep.subr.mxu0 %v941
    %1069 = vmatpush1.msra.mxu0 %v940
    %1070 = vmatprep.subr.mxu0 %v949
    %1071 = vmatpush1.msra.mxu0 %v948
    %1072 = vmatprep.subr.mxu0 %v957
    %1073 = vmatpush1.msra.mxu0 %v956
    %1074 = vmatprep.subr.mxu0 %v965
    %1075 = vmatpush1.msra.mxu0 %v964
    %1076 = vmatprep.subr.mxu0 0.0
    %1077 = vmatpush1.msra.mxu0 0.0
    %1078 = vmatprep.subr.mxu0 0.0
    %1079 = vmatpush1.msra.mxu0 0.0
    %1080 = vmatprep.subr.mxu0 0.0
    %1081 = vmatpush1.msra.mxu0 0.0
    %1082 = vmatprep.subr.mxu0 0.0
    %1083 = vmatpush1.msra.mxu0 0.0
    %1084 = vmatprep.subr.mxu0 0.0
    %1085 = vmatpush1.msra.mxu0 0.0
    %1086 = vmatprep.subr.mxu0 0.0
    %1087 = vmatpush1.msra.mxu0 0.0
    %1088 = vmatprep.subr.mxu0 0.0
    %1089 = vmatpush1.msra.mxu0 0.0
    %1090 = vmatprep.subr.mxu0 0.0
    %1091 = vmatpush1.msra.mxu0 0.0
    %1092 = vmatprep.subr.mxu0 0.0
    %1093 = vmatpush1.msra.mxu0 0.0
    %1094 = vmatprep.subr.mxu0 0.0
    %1095 = vmatpush1.msra.mxu0 0.0
    %1096 = vmatprep.subr.mxu0 0.0
    %1097 = vmatpush1.msra.mxu0 0.0
    %1098 = vmatprep.subr.mxu0 0.0
    %1099 = vmatpush1.msra.mxu0 0.0
    %1100 = vmatprep.subr.mxu0 0.0
    %1101 = vmatpush1.msra.mxu0 0.0
    %1102 = vmatprep.subr.mxu0 0.0
    %1103 = vmatpush1.msra.mxu0 0.0
    %1104 = vmatprep.subr.mxu0 0.0
    %1105 = vmatpush1.msra.mxu0 0.0
    %1106 = vmatprep.subr.mxu0 0.0
    %1107 = vmatpush1.msra.mxu0 0.0
    %1108 = vmatprep.subr.mxu0 0.0
    %1109 = vmatpush1.msra.mxu0 0.0
    %1110 = vmatprep.subr.mxu0 0.0
    %1111 = vmatpush1.msra.mxu0 0.0
    %1112 = vmatprep.subr.mxu0 0.0
    %1113 = vmatpush1.msra.mxu0 0.0
    %1114 = vmatprep.subr.mxu0 0.0
    %1115 = vmatpush1.msra.mxu0 0.0
    %1116 = vmatprep.subr.mxu0 0.0
    %1117 = vmatpush1.msra.mxu0 0.0
    %1118 = vmatprep.subr.mxu0 0.0
    %1119 = vmatpush1.msra.mxu0 0.0
    %1120 = vmatprep.subr.mxu0 0.0
    %1121 = vmatpush1.msra.mxu0 0.0
    %1122 = vmatprep.subr.mxu0 0.0
    %1123 = vmatpush1.msra.mxu0 0.0
    %1124 = vmatprep.subr.mxu0 0.0
    %1125 = vmatpush1.msra.mxu0 0.0
    %1126 = vmatprep.subr.mxu0 0.0
    %1127 = vmatpush1.msra.mxu0 0.0
    %1128 = vmatprep.subr.mxu0 0.0
    %1129 = vmatpush1.msra.mxu0 0.0
    %1130 = vmatprep.subr.mxu0 0.0
    %1131 = vmatpush1.msra.mxu0 0.0
    %1132 = vmatprep.mubr.f32.mxu0 0.0
    %1133 = vmatmul.mubr.f32.gmra.mrb[0].mxu0 %v986
    %v1134 = vpop.f32.mrb[0].mxu0
    %v1135 = vadd.f32 %v977, %v1134
    %v1136 = vpop.f32.mrb[0].mxu0
    %v1137 = vadd.f32 %v977, %v1136
    %1138 = vmatprep.mubr.f32.mxu0 0.0
    %1139 = vmatmul.mubr.f32.gmra.mrb[0].mxu0 %v989
    %v1140 = vpop.f32.mrb[0].mxu0
    %v1141 = vadd.f32 %v982, %v1140
    %v1142 = vpop.f32.mrb[0].mxu0
    %v1143 = vadd.f32 %v982, %v1142
    %1144 = vdwg.mxu0
    %1145 = vmatprep.subr.mxu0 %v943
    %1146 = vmatpush1.msra.mxu0 %v942
    %1147 = vmatprep.subr.mxu0 %v951
    %1148 = vmatpush1.msra.mxu0 %v950
    %1149 = vmatprep.subr.mxu0 %v959
    %1150 = vmatpush1.msra.mxu0 %v958
    %1151 = vmatprep.subr.mxu0 %v967
    %1152 = vmatpush1.msra.mxu0 %v966
    %1153 = vmatprep.subr.mxu0 0.0
    %1154 = vmatpush1.msra.mxu0 0.0
    %1155 = vmatprep.subr.mxu0 0.0
    %1156 = vmatpush1.msra.mxu0 0.0
    %1157 = vmatprep.subr.mxu0 0.0
    %1158 = vmatpush1.msra.mxu0 0.0
    %1159 = vmatprep.subr.mxu0 0.0
    %1160 = vmatpush1.msra.mxu0 0.0
    %1161 = vmatprep.subr.mxu0 0.0
    %1162 = vmatpush1.msra.mxu0 0.0
    %1163 = vmatprep.subr.mxu0 0.0
    %1164 = vmatpush1.msra.mxu0 0.0
    %1165 = vmatprep.subr.mxu0 0.0
    %1166 = vmatpush1.msra.mxu0 0.0
    %1167 = vmatprep.subr.mxu0 0.0
    %1168 = vmatpush1.msra.mxu0 0.0
    %1169 = vmatprep.subr.mxu0 0.0
    %1170 = vmatpush1.msra.mxu0 0.0
    %1171 = vmatprep.subr.mxu0 0.0
    %1172 = vmatpush1.msra.mxu0 0.0
    %1173 = vmatprep.subr.mxu0 0.0
    %1174 = vmatpush1.msra.mxu0 0.0
    %1175 = vmatprep.subr.mxu0 0.0
    %1176 = vmatpush1.msra.mxu0 0.0
    %1177 = vmatprep.subr.mxu0 0.0
    %1178 = vmatpush1.msra.mxu0 0.0
    %1179 = vmatprep.subr.mxu0 0.0
    %1180 = vmatpush1.msra.mxu0 0.0
    %1181 = vmatprep.subr.mxu0 0.0
    %1182 = vmatpush1.msra.mxu0 0.0
    %1183 = vmatprep.subr.mxu0 0.0
    %1184 = vmatpush1.msra.mxu0 0.0
    %1185 = vmatprep.subr.mxu0 0.0
    %1186 = vmatpush1.msra.mxu0 0.0
    %1187 = vmatprep.subr.mxu0 0.0
    %1188 = vmatpush1.msra.mxu0 0.0
    %1189 = vmatprep.subr.mxu0 0.0
    %1190 = vmatpush1.msra.mxu0 0.0
    %1191 = vmatprep.subr.mxu0 0.0
    %1192 = vmatpush1.msra.mxu0 0.0
    %1193 = vmatprep.subr.mxu0 0.0
    %1194 = vmatpush1.msra.mxu0 0.0
    %1195 = vmatprep.subr.mxu0 0.0
    %1196 = vmatpush1.msra.mxu0 0.0
    %1197 = vmatprep.subr.mxu0 0.0
    %1198 = vmatpush1.msra.mxu0 0.0
    %1199 = vmatprep.subr.mxu0 0.0
    %1200 = vmatpush1.msra.mxu0 0.0
    %1201 = vmatprep.subr.mxu0 0.0
    %1202 = vmatpush1.msra.mxu0 0.0
    %1203 = vmatprep.subr.mxu0 0.0
    %1204 = vmatpush1.msra.mxu0 0.0
    %1205 = vmatprep.subr.mxu0 0.0
    %1206 = vmatpush1.msra.mxu0 0.0
    %1207 = vmatprep.subr.mxu0 0.0
    %1208 = vmatpush1.msra.mxu0 0.0
    %1209 = vmatprep.mubr.f32.mxu0 0.0
    %1210 = vmatmul.mubr.f32.gmra.mrb[0].mxu0 %v986
    %v1211 = vpop.f32.mrb[0].mxu0
    %v1212 = vadd.f32 %v977, %v1211
    %v1213 = vpop.f32.mrb[0].mxu0
    %v1214 = vadd.f32 %v977, %v1213
    %1215 = vmatprep.mubr.f32.mxu0 0.0
    %1216 = vmatmul.mubr.f32.gmra.mrb[0].mxu0 %v989
    %v1217 = vpop.f32.mrb[0].mxu0
    %v1218 = vadd.f32 %v982, %v1217
    %v1219 = vpop.f32.mrb[0].mxu0
    %v1220 = vadd.f32 %v982, %v1219
    %1221 = vdwg.mxu0
    %1222 = vmatprep.subr.mxu0 %v945
    %1223 = vmatpush1.msra.mxu0 %v944
    %1224 = vmatprep.subr.mxu0 %v953
    %1225 = vmatpush1.msra.mxu0 %v952
    %1226 = vmatprep.subr.mxu0 %v961
    %1227 = vmatpush1.msra.mxu0 %v960
    %1228 = vmatprep.subr.mxu0 %v969
    %1229 = vmatpush1.msra.mxu0 %v968
    %1230 = vmatprep.subr.mxu0 0.0
    %1231 = vmatpush1.msra.mxu0 0.0
    %1232 = vmatprep.subr.mxu0 0.0
    %1233 = vmatpush1.msra.mxu0 0.0
    %1234 = vmatprep.subr.mxu0 0.0
    %1235 = vmatpush1.msra.mxu0 0.0
    %1236 = vmatprep.subr.mxu0 0.0
    %1237 = vmatpush1.msra.mxu0 0.0
    %1238 = vmatprep.subr.mxu0 0.0
    %1239 = vmatpush1.msra.mxu0 0.0
    %1240 = vmatprep.subr.mxu0 0.0
    %1241 = vmatpush1.msra.mxu0 0.0
    %1242 = vmatprep.subr.mxu0 0.0
    %1243 = vmatpush1.msra.mxu0 0.0
    %1244 = vmatprep.subr.mxu0 0.0
    %1245 = vmatpush1.msra.mxu0 0.0
    %1246 = vmatprep.subr.mxu0 0.0
    %1247 = vmatpush1.msra.mxu0 0.0
    %1248 = vmatprep.subr.mxu0 0.0
    %1249 = vmatpush1.msra.mxu0 0.0
    %1250 = vmatprep.subr.mxu0 0.0
    %1251 = vmatpush1.msra.mxu0 0.0
    %1252 = vmatprep.subr.mxu0 0.0
    %1253 = vmatpush1.msra.mxu0 0.0
    %1254 = vmatprep.subr.mxu0 0.0
    %1255 = vmatpush1.msra.mxu0 0.0
    %1256 = vmatprep.subr.mxu0 0.0
    %1257 = vmatpush1.msra.mxu0 0.0
    %1258 = vmatprep.subr.mxu0 0.0
    %1259 = vmatpush1.msra.mxu0 0.0
    %1260 = vmatprep.subr.mxu0 0.0
    %1261 = vmatpush1.msra.mxu0 0.0
    %1262 = vmatprep.subr.mxu0 0.0
    %1263 = vmatpush1.msra.mxu0 0.0
    %1264 = vmatprep.subr.mxu0 0.0
    %1265 = vmatpush1.msra.mxu0 0.0
    %1266 = vmatprep.subr.mxu0 0.0
    %1267 = vmatpush1.msra.mxu0 0.0
    %1268 = vmatprep.subr.mxu0 0.0
    %1269 = vmatpush1.msra.mxu0 0.0
    %1270 = vmatprep.subr.mxu0 0.0
    %1271 = vmatpush1.msra.mxu0 0.0
    %1272 = vmatprep.subr.mxu0 0.0
    %1273 = vmatpush1.msra.mxu0 0.0
    %1274 = vmatprep.subr.mxu0 0.0
    %1275 = vmatpush1.msra.mxu0 0.0
    %1276 = vmatprep.subr.mxu0 0.0
    %1277 = vmatpush1.msra.mxu0 0.0
    %1278 = vmatprep.subr.mxu0 0.0
    %1279 = vmatpush1.msra.mxu0 0.0
    %1280 = vmatprep.subr.mxu0 0.0
    %1281 = vmatpush1.msra.mxu0 0.0
    %1282 = vmatprep.subr.mxu0 0.0
    %1283 = vmatpush1.msra.mxu0 0.0
    %1284 = vmatprep.subr.mxu0 0.0
    %1285 = vmatpush1.msra.mxu0 0.0
    %1286 = vmatprep.mubr.f32.mxu0 0.0
    %1287 = vmatmul.mubr.f32.gmra.mrb[0].mxu0 %v986
    %v1288 = vpop.f32.mrb[0].mxu0
    %v1289 = vadd.f32 %v977, %v1288
    %v1290 = vpop.f32.mrb[0].mxu0
    %v1291 = vadd.f32 %v977, %v1290
    %1292 = vmatprep.mubr.f32.mxu0 0.0
    %1293 = vmatmul.mubr.f32.gmra.mrb[0].mxu0 %v989
    %v1294 = vpop.f32.mrb[0].mxu0
    %v1295 = vadd.f32 %v982, %v1294
    %v1296 = vpop.f32.mrb[0].mxu0
    %v1297 = vadd.f32 %v982, %v1296
    %1298 = vdwg.mxu0
    %v1299 = vmax.f32 %v1058, 0.0
    %v1300 = vmax.f32 %v1060, 0.0
    %v1301 = vmax.f32 %v1135, 0.0
    %v1302 = vmax.f32 %v1137, 0.0
    %v1303 = vmax.f32 %v1212, 0.0
    %v1304 = vmax.f32 %v1214, 0.0
    %v1305 = vmax.f32 %v1289, 0.0
    %v1306 = vmax.f32 %v1291, 0.0
    %v1307 = vmax.f32 %v1064, 0.0
    %v1308 = vmax.f32 %v1066, 0.0
    %v1309 = vmax.f32 %v1141, 0.0
    %v1310 = vmax.f32 %v1143, 0.0
    %v1311 = vmax.f32 %v1218, 0.0
    %v1312 = vmax.f32 %v1220, 0.0
    %v1313 = vmax.f32 %v1295, 0.0
    %v1314 = vmax.f32 %v1297, 0.0
    %v1315 = vld [vmem:[%s5] sm:$0x1]
    %v1316 = vld [vmem:[#allocation2] sm:$0x1]
    %1318 = vset.pattern.permute.xlu0 0
    %1319 = vperm.xlu0 %1318, %v1316
    %v1320 = vpop.permute.xlu0 %1319
    %v1322 = vlaneseq
    %v1323 = vshrl.u32 %v1322, 7
    %v1324 = vsub.s32 0, %v1323
    %v1325 = vrot.slane %v1320, %v1324
    %vm1326 = vcmask 80896
    %v1328 = vsel %vm1326, %v1315, 0
    %vm1330 = vcmask 1041408
    %v1332 = vsel %vm1330, %v1307, 0
    %v1335 = vsel %vm1330, %v1308, 0
    %v1338 = vsel %vm1330, %v1309, 0
    %v1341 = vsel %vm1330, %v1310, 0
    %v1344 = vsel %vm1330, %v1311, 0
    %v1347 = vsel %vm1330, %v1312, 0
    %v1350 = vsel %vm1330, %v1313, 0
    %v1353 = vsel %vm1330, %v1314, 0
    %1355 = vmatprep.subr.mxu0 %v1300
    %1356 = vmatpush1.msra.mxu0 %v1299
    %1357 = vmatprep.subr.mxu0 %v1335
    %1358 = vmatpush1.msra.mxu0 %v1332
    %1359 = vmatprep.subr.mxu0 0.0
    %1360 = vmatpush1.msra.mxu0 0.0
    %1361 = vmatprep.subr.mxu0 0.0
    %1362 = vmatpush1.msra.mxu0 0.0
    %1363 = vmatprep.subr.mxu0 0.0
    %1364 = vmatpush1.msra.mxu0 0.0
    %1365 = vmatprep.subr.mxu0 0.0
    %1366 = vmatpush1.msra.mxu0 0.0
    %1367 = vmatprep.subr.mxu0 0.0
    %1368 = vmatpush1.msra.mxu0 0.0
    %1369 = vmatprep.subr.mxu0 0.0
    %1370 = vmatpush1.msra.mxu0 0.0
    %1371 = vmatprep.subr.mxu0 0.0
    %1372 = vmatpush1.msra.mxu0 0.0
    %1373 = vmatprep.subr.mxu0 0.0
    %1374 = vmatpush1.msra.mxu0 0.0
    %1375 = vmatprep.subr.mxu0 0.0
    %1376 = vmatpush1.msra.mxu0 0.0
    %1377 = vmatprep.subr.mxu0 0.0
    %1378 = vmatpush1.msra.mxu0 0.0
    %1379 = vmatprep.subr.mxu0 0.0
    %1380 = vmatpush1.msra.mxu0 0.0
    %1381 = vmatprep.subr.mxu0 0.0
    %1382 = vmatpush1.msra.mxu0 0.0
    %1383 = vmatprep.subr.mxu0 0.0
    %1384 = vmatpush1.msra.mxu0 0.0
    %1385 = vmatprep.subr.mxu0 0.0
    %1386 = vmatpush1.msra.mxu0 0.0
    %1387 = vmatprep.subr.mxu0 0.0
    %1388 = vmatpush1.msra.mxu0 0.0
    %1389 = vmatprep.subr.mxu0 0.0
    %1390 = vmatpush1.msra.mxu0 0.0
    %1391 = vmatprep.subr.mxu0 0.0
    %1392 = vmatpush1.msra.mxu0 0.0
    %1393 = vmatprep.subr.mxu0 0.0
    %1394 = vmatpush1.msra.mxu0 0.0
    %1395 = vmatprep.subr.mxu0 0.0
    %1396 = vmatpush1.msra.mxu0 0.0
    %1397 = vmatprep.subr.mxu0 0.0
    %1398 = vmatpush1.msra.mxu0 0.0
    %1399 = vmatprep.subr.mxu0 0.0
    %1400 = vmatpush1.msra.mxu0 0.0
    %1401 = vmatprep.subr.mxu0 0.0
    %1402 = vmatpush1.msra.mxu0 0.0
    %1403 = vmatprep.subr.mxu0 0.0
    %1404 = vmatpush1.msra.mxu0 0.0
    %1405 = vmatprep.subr.mxu0 0.0
    %1406 = vmatpush1.msra.mxu0 0.0
    %1407 = vmatprep.subr.mxu0 0.0
    %1408 = vmatpush1.msra.mxu0 0.0
    %1409 = vmatprep.subr.mxu0 0.0
    %1410 = vmatpush1.msra.mxu0 0.0
    %1411 = vmatprep.subr.mxu0 0.0
    %1412 = vmatpush1.msra.mxu0 0.0
    %1413 = vmatprep.subr.mxu0 0.0
    %1414 = vmatpush1.msra.mxu0 0.0
    %1415 = vmatprep.subr.mxu0 0.0
    %1416 = vmatpush1.msra.mxu0 0.0
    %1417 = vmatprep.subr.mxu0 0.0
    %1418 = vmatpush1.msra.mxu0 0.0
    %1419 = vmatprep.mubr.f32.mxu0 0.0
    %1420 = vmatmul.mubr.f32.gmra.mrb[0].mxu0 %v1328
    %v1421 = vpop.f32.mrb[0].mxu0
    %v1422 = vadd.f32 %v1325, %v1421
    %v1423 = vpop.f32.mrb[0].mxu0
    %v1424 = vadd.f32 %v1325, %v1423
    %1425 = vdwg.mxu0
    %1426 = vmatprep.subr.mxu0 %v1302
    %1427 = vmatpush1.msra.mxu0 %v1301
    %1428 = vmatprep.subr.mxu0 %v1341
    %1429 = vmatpush1.msra.mxu0 %v1338
    %1430 = vmatprep.subr.mxu0 0.0
    %1431 = vmatpush1.msra.mxu0 0.0
    %1432 = vmatprep.subr.mxu0 0.0
    %1433 = vmatpush1.msra.mxu0 0.0
    %1434 = vmatprep.subr.mxu0 0.0
    %1435 = vmatpush1.msra.mxu0 0.0
    %1436 = vmatprep.subr.mxu0 0.0
    %1437 = vmatpush1.msra.mxu0 0.0
    %1438 = vmatprep.subr.mxu0 0.0
    %1439 = vmatpush1.msra.mxu0 0.0
    %1440 = vmatprep.subr.mxu0 0.0
    %1441 = vmatpush1.msra.mxu0 0.0
    %1442 = vmatprep.subr.mxu0 0.0
    %1443 = vmatpush1.msra.mxu0 0.0
    %1444 = vmatprep.subr.mxu0 0.0
    %1445 = vmatpush1.msra.mxu0 0.0
    %1446 = vmatprep.subr.mxu0 0.0
    %1447 = vmatpush1.msra.mxu0 0.0
    %1448 = vmatprep.subr.mxu0 0.0
    %1449 = vmatpush1.msra.mxu0 0.0
    %1450 = vmatprep.subr.mxu0 0.0
    %1451 = vmatpush1.msra.mxu0 0.0
    %1452 = vmatprep.subr.mxu0 0.0
    %1453 = vmatpush1.msra.mxu0 0.0
    %1454 = vmatprep.subr.mxu0 0.0
    %1455 = vmatpush1.msra.mxu0 0.0
    %1456 = vmatprep.subr.mxu0 0.0
    %1457 = vmatpush1.msra.mxu0 0.0
    %1458 = vmatprep.subr.mxu0 0.0
    %1459 = vmatpush1.msra.mxu0 0.0
    %1460 = vmatprep.subr.mxu0 0.0
    %1461 = vmatpush1.msra.mxu0 0.0
    %1462 = vmatprep.subr.mxu0 0.0
    %1463 = vmatpush1.msra.mxu0 0.0
    %1464 = vmatprep.subr.mxu0 0.0
    %1465 = vmatpush1.msra.mxu0 0.0
    %1466 = vmatprep.subr.mxu0 0.0
    %1467 = vmatpush1.msra.mxu0 0.0
    %1468 = vmatprep.subr.mxu0 0.0
    %1469 = vmatpush1.msra.mxu0 0.0
    %1470 = vmatprep.subr.mxu0 0.0
    %1471 = vmatpush1.msra.mxu0 0.0
    %1472 = vmatprep.subr.mxu0 0.0
    %1473 = vmatpush1.msra.mxu0 0.0
    %1474 = vmatprep.subr.mxu0 0.0
    %1475 = vmatpush1.msra.mxu0 0.0
    %1476 = vmatprep.subr.mxu0 0.0
    %1477 = vmatpush1.msra.mxu0 0.0
    %1478 = vmatprep.subr.mxu0 0.0
    %1479 = vmatpush1.msra.mxu0 0.0
    %1480 = vmatprep.subr.mxu0 0.0
    %1481 = vmatpush1.msra.mxu0 0.0
    %1482 = vmatprep.subr.mxu0 0.0
    %1483 = vmatpush1.msra.mxu0 0.0
    %1484 = vmatprep.subr.mxu0 0.0
    %1485 = vmatpush1.msra.mxu0 0.0
    %1486 = vmatprep.subr.mxu0 0.0
    %1487 = vmatpush1.msra.mxu0 0.0
    %1488 = vmatprep.subr.mxu0 0.0
    %1489 = vmatpush1.msra.mxu0 0.0
    %1490 = vmatprep.mubr.f32.mxu0 0.0
    %1491 = vmatmul.mubr.f32.gmra.mrb[0].mxu0 %v1328
    %v1492 = vpop.f32.mrb[0].mxu0
    %v1493 = vadd.f32 %v1325, %v1492
    %v1494 = vpop.f32.mrb[0].mxu0
    %v1495 = vadd.f32 %v1325, %v1494
    %1496 = vdwg.mxu0
    %1497 = vmatprep.subr.mxu0 %v1304
    %1498 = vmatpush1.msra.mxu0 %v1303
    %1499 = vmatprep.subr.mxu0 %v1347
    %1500 = vmatpush1.msra.mxu0 %v1344
    %1501 = vmatprep.subr.mxu0 0.0
    %1502 = vmatpush1.msra.mxu0 0.0
    %1503 = vmatprep.subr.mxu0 0.0
    %1504 = vmatpush1.msra.mxu0 0.0
    %1505 = vmatprep.subr.mxu0 0.0
    %1506 = vmatpush1.msra.mxu0 0.0
    %1507 = vmatprep.subr.mxu0 0.0
    %1508 = vmatpush1.msra.mxu0 0.0
    %1509 = vmatprep.subr.mxu0 0.0
    %1510 = vmatpush1.msra.mxu0 0.0
    %1511 = vmatprep.subr.mxu0 0.0
    %1512 = vmatpush1.msra.mxu0 0.0
    %1513 = vmatprep.subr.mxu0 0.0
    %1514 = vmatpush1.msra.mxu0 0.0
    %1515 = vmatprep.subr.mxu0 0.0
    %1516 = vmatpush1.msra.mxu0 0.0
    %1517 = vmatprep.subr.mxu0 0.0
    %1518 = vmatpush1.msra.mxu0 0.0
    %1519 = vmatprep.subr.mxu0 0.0
    %1520 = vmatpush1.msra.mxu0 0.0
    %1521 = vmatprep.subr.mxu0 0.0
    %1522 = vmatpush1.msra.mxu0 0.0
    %1523 = vmatprep.subr.mxu0 0.0
    %1524 = vmatpush1.msra.mxu0 0.0
    %1525 = vmatprep.subr.mxu0 0.0
    %1526 = vmatpush1.msra.mxu0 0.0
    %1527 = vmatprep.subr.mxu0 0.0
    %1528 = vmatpush1.msra.mxu0 0.0
    %1529 = vmatprep.subr.mxu0 0.0
    %1530 = vmatpush1.msra.mxu0 0.0
    %1531 = vmatprep.subr.mxu0 0.0
    %1532 = vmatpush1.msra.mxu0 0.0
    %1533 = vmatprep.subr.mxu0 0.0
    %1534 = vmatpush1.msra.mxu0 0.0
    %1535 = vmatprep.subr.mxu0 0.0
    %1536 = vmatpush1.msra.mxu0 0.0
    %1537 = vmatprep.subr.mxu0 0.0
    %1538 = vmatpush1.msra.mxu0 0.0
    %1539 = vmatprep.subr.mxu0 0.0
    %1540 = vmatpush1.msra.mxu0 0.0
    %1541 = vmatprep.subr.mxu0 0.0
    %1542 = vmatpush1.msra.mxu0 0.0
    %1543 = vmatprep.subr.mxu0 0.0
    %1544 = vmatpush1.msra.mxu0 0.0
    %1545 = vmatprep.subr.mxu0 0.0
    %1546 = vmatpush1.msra.mxu0 0.0
    %1547 = vmatprep.subr.mxu0 0.0
    %1548 = vmatpush1.msra.mxu0 0.0
    %1549 = vmatprep.subr.mxu0 0.0
    %1550 = vmatpush1.msra.mxu0 0.0
    %1551 = vmatprep.subr.mxu0 0.0
    %1552 = vmatpush1.msra.mxu0 0.0
    %1553 = vmatprep.subr.mxu0 0.0
    %1554 = vmatpush1.msra.mxu0 0.0
    %1555 = vmatprep.subr.mxu0 0.0
    %1556 = vmatpush1.msra.mxu0 0.0
    %1557 = vmatprep.subr.mxu0 0.0
    %1558 = vmatpush1.msra.mxu0 0.0
    %1559 = vmatprep.subr.mxu0 0.0
    %1560 = vmatpush1.msra.mxu0 0.0
    %1561 = vmatprep.mubr.f32.mxu0 0.0
    %1562 = vmatmul.mubr.f32.gmra.mrb[0].mxu0 %v1328
    %v1563 = vpop.f32.mrb[0].mxu0
    %v1564 = vadd.f32 %v1325, %v1563
    %v1565 = vpop.f32.mrb[0].mxu0
    %v1566 = vadd.f32 %v1325, %v1565
    %1567 = vdwg.mxu0
    %1568 = vmatprep.subr.mxu0 %v1306
    %1569 = vmatpush1.msra.mxu0 %v1305
    %1570 = vmatprep.subr.mxu0 %v1353
    %1571 = vmatpush1.msra.mxu0 %v1350
    %1572 = vmatprep.subr.mxu0 0.0
    %1573 = vmatpush1.msra.mxu0 0.0
    %1574 = vmatprep.subr.mxu0 0.0
    %1575 = vmatpush1.msra.mxu0 0.0
    %1576 = vmatprep.subr.mxu0 0.0
    %1577 = vmatpush1.msra.mxu0 0.0
    %1578 = vmatprep.subr.mxu0 0.0
    %1579 = vmatpush1.msra.mxu0 0.0
    %1580 = vmatprep.subr.mxu0 0.0
    %1581 = vmatpush1.msra.mxu0 0.0
    %1582 = vmatprep.subr.mxu0 0.0
    %1583 = vmatpush1.msra.mxu0 0.0
    %1584 = vmatprep.subr.mxu0 0.0
    %1585 = vmatpush1.msra.mxu0 0.0
    %1586 = vmatprep.subr.mxu0 0.0
    %1587 = vmatpush1.msra.mxu0 0.0
    %1588 = vmatprep.subr.mxu0 0.0
    %1589 = vmatpush1.msra.mxu0 0.0
    %1590 = vmatprep.subr.mxu0 0.0
    %1591 = vmatpush1.msra.mxu0 0.0
    %1592 = vmatprep.subr.mxu0 0.0
    %1593 = vmatpush1.msra.mxu0 0.0
    %1594 = vmatprep.subr.mxu0 0.0
    %1595 = vmatpush1.msra.mxu0 0.0
    %1596 = vmatprep.subr.mxu0 0.0
    %1597 = vmatpush1.msra.mxu0 0.0
    %1598 = vmatprep.subr.mxu0 0.0
    %1599 = vmatpush1.msra.mxu0 0.0
    %1600 = vmatprep.subr.mxu0 0.0
    %1601 = vmatpush1.msra.mxu0 0.0
    %1602 = vmatprep.subr.mxu0 0.0
    %1603 = vmatpush1.msra.mxu0 0.0
    %1604 = vmatprep.subr.mxu0 0.0
    %1605 = vmatpush1.msra.mxu0 0.0
    %1606 = vmatprep.subr.mxu0 0.0
    %1607 = vmatpush1.msra.mxu0 0.0
    %1608 = vmatprep.subr.mxu0 0.0
    %1609 = vmatpush1.msra.mxu0 0.0
    %1610 = vmatprep.subr.mxu0 0.0
    %1611 = vmatpush1.msra.mxu0 0.0
    %1612 = vmatprep.subr.mxu0 0.0
    %1613 = vmatpush1.msra.mxu0 0.0
    %1614 = vmatprep.subr.mxu0 0.0
    %1615 = vmatpush1.msra.mxu0 0.0
    %1616 = vmatprep.subr.mxu0 0.0
    %1617 = vmatpush1.msra.mxu0 0.0
    %1618 = vmatprep.subr.mxu0 0.0
    %1619 = vmatpush1.msra.mxu0 0.0
    %1620 = vmatprep.subr.mxu0 0.0
    %1621 = vmatpush1.msra.mxu0 0.0
    %1622 = vmatprep.subr.mxu0 0.0
    %1623 = vmatpush1.msra.mxu0 0.0
    %1624 = vmatprep.subr.mxu0 0.0
    %1625 = vmatpush1.msra.mxu0 0.0
    %1626 = vmatprep.subr.mxu0 0.0
    %1627 = vmatpush1.msra.mxu0 0.0
    %1628 = vmatprep.subr.mxu0 0.0
    %1629 = vmatpush1.msra.mxu0 0.0
    %1630 = vmatprep.subr.mxu0 0.0
    %1631 = vmatpush1.msra.mxu0 0.0
    %1632 = vmatprep.mubr.f32.mxu0 0.0
    %1633 = vmatmul.mubr.f32.gmra.mrb[0].mxu0 %v1328
    %v1634 = vpop.f32.mrb[0].mxu0
    %v1635 = vadd.f32 %v1325, %v1634
    %v1636 = vpop.f32.mrb[0].mxu0
    %v1637 = vadd.f32 %v1325, %v1636
    %1638 = vdwg.mxu0
    %v1647 = vcombine.low %v1422, %v1424
    %v1648 = vcombine.low %v1493, %v1495
    %v1649 = vcombine.low %v1564, %v1566
    %v1650 = vcombine.low %v1635, %v1637
    %v1652 = vunpack.c.l.s4 1966171168
    %v1653 = vunpack.c.0.s8 %v1652
    %v1654 = vlaneseq
    %v1655 = vshrl.u32 %v1654, 7
    %v1656 = vsub.s32 %v1653, %v1655
    %v1657 = vrot.slane %v1647, %v1656
    %v1659 = vunpack.c.l.s4 1966171168
    %v1660 = vunpack.c.0.s8 %v1659
    %v1661 = vlaneseq
    %v1662 = vshrl.u32 %v1661, 7
    %v1663 = vsub.s32 %v1660, %v1662
    %v1664 = vrot.slane %v1648, %v1663
    %v1666 = vunpack.c.l.s4 1966171168
    %v1667 = vunpack.c.0.s8 %v1666
    %v1668 = vlaneseq
    %v1669 = vshrl.u32 %v1668, 7
    %v1670 = vsub.s32 %v1667, %v1669
    %v1671 = vrot.slane %v1649, %v1670
    %v1673 = vunpack.c.l.s4 1966171168
    %v1674 = vunpack.c.0.s8 %v1673
    %v1675 = vlaneseq
    %v1676 = vshrl.u32 %v1675, 7
    %v1677 = vsub.s32 %v1674, %v1676
    %v1678 = vrot.slane %v1650, %v1677
    %v1679 = vcombine.low %v1657, %v1664
    %v1680 = vcombine.low %v1671, %v1678
    %v1682 = vunpack.c.l.s4 1966171168
    %v1683 = vunpack.c.0.s8 %v1682
    %v1684 = vlaneseq
    %v1685 = vshrl.u32 %v1684, 7
    %v1686 = vsub.s32 %v1683, %v1685
    %v1687 = vrot.slane %v1679, %v1686
    %v1689 = vunpack.c.l.s4 1966171168
    %v1690 = vunpack.c.0.s8 %v1689
    %v1691 = vlaneseq
    %v1692 = vshrl.u32 %v1691, 7
    %v1693 = vsub.s32 %v1690, %v1692
    %v1694 = vrot.slane %v1680, %v1693
    %v1695 = vcombine.low %v1687, %v1694
    %1697 = vst [vmem:[#allocation3] sm:$0xff] %v1695
    // Predicated region
    $region30: #{tpu_custom_call.1} parent=1 // pred_check
      _
    $region31: #{tpu_custom_call.1} parent=1 // pred_check_branch
      %1699 = sbr.rel (0) target = $region33
    $region32: #{tpu_custom_call.1} parent=1 // pred_region
      %s1701 = ssub.s32 128, 128
      %1702 = vsyncadd [#allocation4], %s1701
      %s1704 = sshll.u32 [#allocation3], 4
      %s1705 = int_to_ptr.vmem [resolvable:$true] %s1704
      %1707 = dma.vmem_to_hbm [thread:$0]  %s1705, 128, %s7, [#allocation4]
    $region33: #{tpu_custom_call.1} parent=1 // pred_fallthru
      _
    // Predicated region
    $region34: #{tpu_custom_call.1} parent=1 // pred_check
      _
    $region35: #{tpu_custom_call.1} parent=1 // pred_check_branch
      %1709 = sbr.rel (0) target = $region37
    $region36: #{tpu_custom_call.1} parent=1 // pred_region
      %1710 = dma.done [#allocation4], 128
    $region37: #{tpu_custom_call.1} parent=1 // pred_fallthru
      _
    %1711 = vsyncpa [#allocation4], 1

</llo_original>
